<compile_context>
chip_gen: v5e
topology: v5e:2x2
jax: 0.10.0
libtpu: 0.0.40
codegen_flags: <defaults>
</compile_context>

<pallas_src>
import jax
import jax.numpy as jnp
from jax.experimental import pallas as pl
from jax.experimental.pallas import tpu as pltpu

# ----------------------------- tiny ViT config ------------------------------
IMG, PATCH, CIN = 16, 8, 3
WIDTH, HEADS, LAYERS = 32, 2, 2
HEAD_DIM = WIDTH // HEADS
MLP_DIM = 4 * WIDTH
EMBED = 16
GRID_SZ = IMG // PATCH
NPATCH = GRID_SZ * GRID_SZ
TOKENS = NPATCH + 1
PATCH_DIM = CIN * PATCH * PATCH
EPS = 1e-5


def _layernorm(x, g, b):
    mu = jnp.mean(x, axis=-1, keepdims=True)
    var = jnp.mean((x - mu) ** 2, axis=-1, keepdims=True)
    return (x - mu) * jax.lax.rsqrt(var + EPS) * g + b


# --------------------------- fully fused ViT kernel --------------------------
def _vit_kernel(patches_ref, w_patch_ref, cls_ref, pos_ref, mask_ref,
                g_pre_ref, b_pre_ref,
                g1_ref, b1_ref, wqkv_ref, bqkv_ref, wo_ref, bo_ref,
                g2_ref, b2_ref, w1_ref, bm1_ref, w2_ref, bm2_ref,
                g_post_ref, b_post_ref, proj_ref,
                o_ref, x_scr):
    B = patches_ref.shape[0] // NPATCH
    BT = B * TOKENS

    # conv1 (kernel=stride=PATCH, no bias) == single MXU matmul over all patches.
    emb = jnp.dot(patches_ref[...], w_patch_ref[...],
                  preferred_element_type=jnp.float32)            # (B*NPATCH, W)

    # [cls] ++ patches, + positional embedding, assembled in a VMEM scratch.
    for b in range(B):
        r = b * TOKENS
        x_scr[r:r + 1, :] = cls_ref[...] + pos_ref[0:1, :]
        x_scr[r + 1:r + TOKENS, :] = (
            emb[b * NPATCH:(b + 1) * NPATCH, :] + pos_ref[1:TOKENS, :])

    # ln_pre over all B*TOKENS rows at once.
    x = _layernorm(x_scr[...], g_pre_ref[...], b_pre_ref[...])   # (BT, W)

    mask = mask_ref[...]                 # block-diagonal additive mask (BT, BT)

    for l in range(LAYERS):
        # ------------------------------ attention ---------------------------
        h = _layernorm(x, g1_ref[l], b1_ref[l])
        qkv = jnp.dot(h, wqkv_ref[l],
                      preferred_element_type=jnp.float32) + bqkv_ref[l]
        wo_l = wo_ref[l]
        attn = jnp.zeros((BT, WIDTH), jnp.float32)
        for hh in range(HEADS):
            lo = hh * HEAD_DIM
            qh = qkv[:, lo:lo + HEAD_DIM]            # scale pre-folded into W_q
            kh = qkv[:, WIDTH + lo:WIDTH + lo + HEAD_DIM]
            vh = qkv[:, 2 * WIDTH + lo:2 * WIDTH + lo + HEAD_DIM]
            s = jax.lax.dot_general(qh, kh, (((1,), (1,)), ((), ())),
                                    preferred_element_type=jnp.float32)
            s = s + mask                              # keep attention per-image
            s = s - jnp.max(s, axis=-1, keepdims=True)
            p = jnp.exp(s)
            p = p * pl.reciprocal(jnp.sum(p, axis=-1, keepdims=True), approx=True)
            ctx = jnp.dot(p, vh, preferred_element_type=jnp.float32)   # (BT, HD)
            # fold head concat into the out-proj: sum_h ctx_h @ Wo[h*HD:(h+1)*HD]
            attn = attn + jnp.dot(ctx, wo_l[lo:lo + HEAD_DIM, :],
                                  preferred_element_type=jnp.float32)
        x = x + attn + bo_ref[l]

        # -------------------------------- MLP --------------------------------
        h2 = _layernorm(x, g2_ref[l], b2_ref[l])
        mid = jnp.dot(h2, w1_ref[l],
                      preferred_element_type=jnp.float32) + bm1_ref[l]
        mid = mid * jax.nn.sigmoid(1.702 * mid)                 # QuickGELU
        x = x + jnp.dot(mid, w2_ref[l],
                        preferred_element_type=jnp.float32) + bm2_ref[l]

    # ln_post + proj on all rows (same vreg tiles), store only each cls row.
    hp = _layernorm(x, g_post_ref[...], b_post_ref[...])
    out_all = jnp.dot(hp, proj_ref[...], preferred_element_type=jnp.float32)
    for b in range(B):
        o_ref[b:b + 1, :] = out_all[b * TOKENS:b * TOKENS + 1, :]


# --------------------------- deterministic params ----------------------------
def init_params(key):
    ks = iter(jax.random.split(key, 64))
    nrm = lambda shape, s=0.02: (s * jax.random.normal(next(ks), shape)).astype(jnp.float32)
    params = {
        # PyTorch conv1 weight layout (WIDTH, CIN, PATCH, PATCH)
        "conv_w": nrm((WIDTH, CIN, PATCH, PATCH)),
        "cls": nrm((WIDTH,)),
        "pos": nrm((TOKENS, WIDTH)),
        "ln_pre_g": jnp.ones((1, WIDTH), jnp.float32),
        "ln_pre_b": jnp.zeros((1, WIDTH), jnp.float32),
        "ln_post_g": jnp.ones((1, WIDTH), jnp.float32),
        "ln_post_b": jnp.zeros((1, WIDTH), jnp.float32),
        "proj": nrm((WIDTH, EMBED)),
        "layers": [],
    }
    for _ in range(LAYERS):
        params["layers"].append((
            jnp.ones((1, WIDTH), jnp.float32),            # ln_1 gamma
            jnp.zeros((1, WIDTH), jnp.float32),           # ln_1 beta
            nrm((WIDTH, 3 * WIDTH)),                      # in_proj_weight.T
            nrm((1, 3 * WIDTH)),                          # in_proj_bias
            nrm((WIDTH, WIDTH)),                          # out_proj.weight.T
            nrm((1, WIDTH)),                              # out_proj.bias
            jnp.ones((1, WIDTH), jnp.float32),            # ln_2 gamma
            jnp.zeros((1, WIDTH), jnp.float32),           # ln_2 beta
            nrm((WIDTH, MLP_DIM)),                        # mlp.c_fc.weight.T
            nrm((1, MLP_DIM)),                            # mlp.c_fc.bias
            nrm((MLP_DIM, WIDTH)),                        # mlp.c_proj.weight.T
            nrm((1, WIDTH)),                              # mlp.c_proj.bias
        ))
    return params


def prepare_params(params):
    """One-time host-side re-parameterization (mathematically equivalent):
    flatten conv1 weight to (PATCH_DIM, WIDTH), fold the attention scale into
    the q columns of in_proj weight/bias, stack per-layer weights."""
    stack = lambda i: jnp.stack([layer[i] for layer in params["layers"]], axis=0)
    scale = jnp.float32(HEAD_DIM ** -0.5)
    wqkv = stack(2).at[:, :, :WIDTH].multiply(scale)
    bqkv = stack(3).at[:, :, :WIDTH].multiply(scale)
    return {
        "w_patch": params["conv_w"].reshape(WIDTH, PATCH_DIM).T,   # (PATCH_DIM, W)
        "cls": params["cls"].reshape(1, WIDTH),
        "pos": params["pos"],
        "ln_pre_g": params["ln_pre_g"], "ln_pre_b": params["ln_pre_b"],
        "g1": stack(0), "b1": stack(1),
        "wqkv": wqkv, "bqkv": bqkv,
        "wo": stack(4), "bo": stack(5),
        "g2": stack(6), "b2": stack(7),
        "w1": stack(8), "bm1": stack(9),
        "w2": stack(10), "bm2": stack(11),
        "ln_post_g": params["ln_post_g"], "ln_post_b": params["ln_post_b"],
        "proj": params["proj"],
    }


def _full_spec(arr):
    zeros = (0,) * arr.ndim
    return pl.BlockSpec(arr.shape, lambda i, z=zeros: z)


# ---------------------------------- forward ----------------------------------
@jax.jit
def encode_image(images, prep):
    B = images.shape[0]
    BT = B * TOKENS
    # patchify (== conv with kernel=stride=PATCH): flatten order (C, Ph, Pw)
    p = images.reshape(B, CIN, GRID_SZ, PATCH, GRID_SZ, PATCH)
    p = p.transpose(0, 2, 4, 1, 3, 5).reshape(B * NPATCH, PATCH_DIM)
    # block-diagonal additive mask so all images share one flattened token slab
    # (constant-folded by XLA: depends only on static shapes).
    img_id = jnp.arange(BT, dtype=jnp.int32) // TOKENS
    mask = jnp.where(img_id[:, None] == img_id[None, :], 0.0, -1e30).astype(jnp.float32)

    operands = [p, prep["w_patch"], prep["cls"], prep["pos"], mask,
                prep["ln_pre_g"], prep["ln_pre_b"],
                prep["g1"], prep["b1"], prep["wqkv"], prep["bqkv"],
                prep["wo"], prep["bo"], prep["g2"], prep["b2"],
                prep["w1"], prep["bm1"], prep["w2"], prep["bm2"],
                prep["ln_post_g"], prep["ln_post_b"], prep["proj"]]

    return pl.pallas_call(
        _vit_kernel,
        out_shape=jax.ShapeDtypeStruct((B, EMBED), jnp.float32),
        grid=(1,),
        in_specs=[_full_spec(op) for op in operands],
        out_specs=pl.BlockSpec((B, EMBED), lambda i: (0, 0)),
        scratch_shapes=[pltpu.VMEM((BT, WIDTH), jnp.float32)],
        compiler_params=pltpu.CompilerParams(dimension_semantics=("arbitrary",)),
    )(*operands)


# TODO(synk): open_clip checkpoint loading and torchvision/timm preprocessing
# transforms have no Pallas equivalent; weights are synthetic deterministic init.

if __name__ == "__main__":
    key = jax.random.PRNGKey(0)
    k_img, k_par = jax.random.split(key)
    images = jax.random.normal(k_img, (2, CIN, IMG, IMG), dtype=jnp.float32)  # NCHW
    params = init_params(k_par)
    prep = prepare_params(params)          # one-time host-side weight prep
    out = encode_image(images, prep)
    out = jax.block_until_ready(out)
    assert out.shape == (2, EMBED) and out.dtype == jnp.float32
    print("KERNEL_OK")
</pallas_src>

<mosaic_0001>
module attributes {stable_mosaic.version = 11 : i64} {
  func.func @_vit_kernel(%arg0: i32, %arg1: memref<8x192xf32, #tpu.memory_space<vmem>>, %arg2: memref<192x32xf32, #tpu.memory_space<vmem>>, %arg3: memref<1x32xf32, #tpu.memory_space<vmem>>, %arg4: memref<5x32xf32, #tpu.memory_space<vmem>>, %arg5: memref<10x10xf32, #tpu.memory_space<vmem>>, %arg6: memref<1x32xf32, #tpu.memory_space<vmem>>, %arg7: memref<1x32xf32, #tpu.memory_space<vmem>>, %arg8: memref<2x1x32xf32, #tpu.memory_space<vmem>>, %arg9: memref<2x1x32xf32, #tpu.memory_space<vmem>>, %arg10: memref<2x32x96xf32, #tpu.memory_space<vmem>>, %arg11: memref<2x1x96xf32, #tpu.memory_space<vmem>>, %arg12: memref<2x32x32xf32, #tpu.memory_space<vmem>>, %arg13: memref<2x1x32xf32, #tpu.memory_space<vmem>>, %arg14: memref<2x1x32xf32, #tpu.memory_space<vmem>>, %arg15: memref<2x1x32xf32, #tpu.memory_space<vmem>>, %arg16: memref<2x32x128xf32, #tpu.memory_space<vmem>>, %arg17: memref<2x1x128xf32, #tpu.memory_space<vmem>>, %arg18: memref<2x128x32xf32, #tpu.memory_space<vmem>>, %arg19: memref<2x1x32xf32, #tpu.memory_space<vmem>>, %arg20: memref<1x32xf32, #tpu.memory_space<vmem>>, %arg21: memref<1x32xf32, #tpu.memory_space<vmem>>, %arg22: memref<32x16xf32, #tpu.memory_space<vmem>>, %arg23: memref<2x16xf32, #tpu.memory_space<vmem>>, %arg24: memref<10x32xf32, #tpu.memory_space<vmem>>) attributes {dimension_semantics = [#tpu.dimension_semantics<arbitrary>], iteration_bounds = array<i64: 1>, scalar_prefetch = 0 : i64, scratch_operands = 1 : i64, tpu.core_type = #tpu.core_type<tc>, window_params = [{pipeline_mode = #tpu.pipeline_mode<synchronous>, transform_indices = @transform_0, window_bounds = array<i64: 8, 192>}, {pipeline_mode = #tpu.pipeline_mode<synchronous>, transform_indices = @transform_1, window_bounds = array<i64: 192, 32>}, {pipeline_mode = #tpu.pipeline_mode<synchronous>, transform_indices = @transform_2, window_bounds = array<i64: 1, 32>}, {pipeline_mode = #tpu.pipeline_mode<synchronous>, transform_indices = @transform_3, window_bounds = array<i64: 5, 32>}, {pipeline_mode = #tpu.pipeline_mode<synchronous>, transform_indices = @transform_4, window_bounds = array<i64: 10, 10>}, {pipeline_mode = #tpu.pipeline_mode<synchronous>, transform_indices = @transform_5, window_bounds = array<i64: 1, 32>}, {pipeline_mode = #tpu.pipeline_mode<synchronous>, transform_indices = @transform_6, window_bounds = array<i64: 1, 32>}, {pipeline_mode = #tpu.pipeline_mode<synchronous>, transform_indices = @transform_7, window_bounds = array<i64: 2, 1, 32>}, {pipeline_mode = #tpu.pipeline_mode<synchronous>, transform_indices = @transform_8, window_bounds = array<i64: 2, 1, 32>}, {pipeline_mode = #tpu.pipeline_mode<synchronous>, transform_indices = @transform_9, window_bounds = array<i64: 2, 32, 96>}, {pipeline_mode = #tpu.pipeline_mode<synchronous>, transform_indices = @transform_10, window_bounds = array<i64: 2, 1, 96>}, {pipeline_mode = #tpu.pipeline_mode<synchronous>, transform_indices = @transform_11, window_bounds = array<i64: 2, 32, 32>}, {pipeline_mode = #tpu.pipeline_mode<synchronous>, transform_indices = @transform_12, window_bounds = array<i64: 2, 1, 32>}, {pipeline_mode = #tpu.pipeline_mode<synchronous>, transform_indices = @transform_13, window_bounds = array<i64: 2, 1, 32>}, {pipeline_mode = #tpu.pipeline_mode<synchronous>, transform_indices = @transform_14, window_bounds = array<i64: 2, 1, 32>}, {pipeline_mode = #tpu.pipeline_mode<synchronous>, transform_indices = @transform_15, window_bounds = array<i64: 2, 32, 128>}, {pipeline_mode = #tpu.pipeline_mode<synchronous>, transform_indices = @transform_16, window_bounds = array<i64: 2, 1, 128>}, {pipeline_mode = #tpu.pipeline_mode<synchronous>, transform_indices = @transform_17, window_bounds = array<i64: 2, 128, 32>}, {pipeline_mode = #tpu.pipeline_mode<synchronous>, transform_indices = @transform_18, window_bounds = array<i64: 2, 1, 32>}, {pipeline_mode = #tpu.pipeline_mode<synchronous>, transform_indices = @transform_19, window_bounds = array<i64: 1, 32>}, {pipeline_mode = #tpu.pipeline_mode<synchronous>, transform_indices = @transform_20, window_bounds = array<i64: 1, 32>}, {pipeline_mode = #tpu.pipeline_mode<synchronous>, transform_indices = @transform_21, window_bounds = array<i64: 32, 16>}, {pipeline_mode = #tpu.pipeline_mode<synchronous>, transform_indices = @transform_22, window_bounds = array<i64: 2, 16>}]} {
    %c0 = arith.constant 0 : index
    %c0_0 = arith.constant 0 : index
    %0 = vector.load %arg1[%c0, %c0_0] : memref<8x192xf32, #tpu.memory_space<vmem>>, vector<8x192xf32>
    %c0_1 = arith.constant 0 : index
    %c0_2 = arith.constant 0 : index
    %1 = vector.load %arg2[%c0_1, %c0_2] : memref<192x32xf32, #tpu.memory_space<vmem>>, vector<192x32xf32>
    %cst = arith.constant dense<0.000000e+00> : vector<8x32xf32>
    %2 = tpu.matmul %0, %1, %cst {dimension_numbers = #tpu.dot_dimension_numbers<[1], [0], [0], [1], [0, 0, 1, 1], [], []>} : vector<8x192xf32>, vector<192x32xf32>, vector<8x32xf32> -> vector<8x32xf32>
    %c0_3 = arith.constant 0 : index
    %c0_4 = arith.constant 0 : index
    %3 = vector.load %arg3[%c0_3, %c0_4] : memref<1x32xf32, #tpu.memory_space<vmem>>, vector<1x32xf32>
    %c0_5 = arith.constant 0 : index
    %c0_6 = arith.constant 0 : index
    %4 = vector.load %arg4[%c0_5, %c0_6] : memref<5x32xf32, #tpu.memory_space<vmem>>, vector<1x32xf32>
    %5 = arith.addf %3, %4 : vector<1x32xf32>
    %c0_7 = arith.constant 0 : index
    %c0_8 = arith.constant 0 : index
    %6 = vector.load %arg24[%c0_7, %c0_8] : memref<10x32xf32, #tpu.memory_space<vmem>>, vector<1x32xf32>
    tpu.vector_store %arg24[%c0_7, %c0_8], %5 {strides = array<i32>} : memref<10x32xf32, #tpu.memory_space<vmem>>, vector<1x32xf32>,
    %7 = vector.extract_strided_slice %2 {offsets = [0, 0], sizes = [4, 32], strides = [1, 1]} : vector<8x32xf32> to vector<4x32xf32>
    %c1 = arith.constant 1 : index
    %c0_9 = arith.constant 0 : index
    %8 = vector.load %arg4[%c1, %c0_9] : memref<5x32xf32, #tpu.memory_space<vmem>>, vector<4x32xf32>
    %9 = arith.addf %7, %8 : vector<4x32xf32>
    %c1_10 = arith.constant 1 : index
    %c0_11 = arith.constant 0 : index
    %10 = vector.load %arg24[%c1_10, %c0_11] : memref<10x32xf32, #tpu.memory_space<vmem>>, vector<4x32xf32>
    tpu.vector_store %arg24[%c1_10, %c0_11], %9 {strides = array<i32>} : memref<10x32xf32, #tpu.memory_space<vmem>>, vector<4x32xf32>,
    %c0_12 = arith.constant 0 : index
    %c0_13 = arith.constant 0 : index
    %11 = vector.load %arg3[%c0_12, %c0_13] : memref<1x32xf32, #tpu.memory_space<vmem>>, vector<1x32xf32>
    %c0_14 = arith.constant 0 : index
    %c0_15 = arith.constant 0 : index
    %12 = vector.load %arg4[%c0_14, %c0_15] : memref<5x32xf32, #tpu.memory_space<vmem>>, vector<1x32xf32>
    %13 = arith.addf %11, %12 : vector<1x32xf32>
    %c5 = arith.constant 5 : index
    %c0_16 = arith.constant 0 : index
    %14 = vector.load %arg24[%c5, %c0_16] : memref<10x32xf32, #tpu.memory_space<vmem>>, vector<1x32xf32>
    tpu.vector_store %arg24[%c5, %c0_16], %13 {strides = array<i32>} : memref<10x32xf32, #tpu.memory_space<vmem>>, vector<1x32xf32>,
    %15 = vector.extract_strided_slice %2 {offsets = [4, 0], sizes = [4, 32], strides = [1, 1]} : vector<8x32xf32> to vector<4x32xf32>
    %c1_17 = arith.constant 1 : index
    %c0_18 = arith.constant 0 : index
    %16 = vector.load %arg4[%c1_17, %c0_18] : memref<5x32xf32, #tpu.memory_space<vmem>>, vector<4x32xf32>
    %17 = arith.addf %15, %16 : vector<4x32xf32>
    %c6 = arith.constant 6 : index
    %c0_19 = arith.constant 0 : index
    %18 = vector.load %arg24[%c6, %c0_19] : memref<10x32xf32, #tpu.memory_space<vmem>>, vector<4x32xf32>
    tpu.vector_store %arg24[%c6, %c0_19], %17 {strides = array<i32>} : memref<10x32xf32, #tpu.memory_space<vmem>>, vector<4x32xf32>,
    %c0_20 = arith.constant 0 : index
    %c0_21 = arith.constant 0 : index
    %19 = vector.load %arg24[%c0_20, %c0_21] : memref<10x32xf32, #tpu.memory_space<vmem>>, vector<10x32xf32>
    %c0_22 = arith.constant 0 : index
    %c0_23 = arith.constant 0 : index
    %20 = vector.load %arg6[%c0_22, %c0_23] : memref<1x32xf32, #tpu.memory_space<vmem>>, vector<1x32xf32>
    %c0_24 = arith.constant 0 : index
    %c0_25 = arith.constant 0 : index
    %21 = vector.load %arg7[%c0_24, %c0_25] : memref<1x32xf32, #tpu.memory_space<vmem>>, vector<1x32xf32>
    %cst_26 = arith.constant dense<0.000000e+00> : vector<10xf32>
    %22 = vector.multi_reduction <add>, %19, %cst_26 [1] : vector<10x32xf32> to vector<10xf32>
    %23 = vector.shape_cast %22 : vector<10xf32> to vector<10x1xf32>
    %cst_27 = arith.constant 3.200000e+01 : f32
    %24 = vector.broadcast %cst_27 : f32 to vector<10x1xf32>
    %25 = arith.divf %23, %24 : vector<10x1xf32>
    %26 = vector.broadcast %25 : vector<10x1xf32> to vector<10x32xf32>
    %27 = arith.subf %19, %26 : vector<10x32xf32>
    %28 = arith.mulf %27, %27 : vector<10x32xf32>
    %cst_28 = arith.constant dense<0.000000e+00> : vector<10xf32>
    %29 = vector.multi_reduction <add>, %28, %cst_28 [1] : vector<10x32xf32> to vector<10xf32>
    %30 = vector.shape_cast %29 : vector<10xf32> to vector<10x1xf32>
    %cst_29 = arith.constant 3.200000e+01 : f32
    %31 = vector.broadcast %cst_29 : f32 to vector<10x1xf32>
    %32 = arith.divf %30, %31 : vector<10x1xf32>
    %33 = vector.broadcast %25 : vector<10x1xf32> to vector<10x32xf32>
    %34 = arith.subf %19, %33 : vector<10x32xf32>
    %cst_30 = arith.constant 9.99999974E-6 : f32
    %35 = vector.broadcast %cst_30 : f32 to vector<10x1xf32>
    %36 = arith.addf %32, %35 : vector<10x1xf32>
    %37 = math.rsqrt %36 : vector<10x1xf32>
    %38 = vector.broadcast %37 : vector<10x1xf32> to vector<10x32xf32>
    %39 = arith.mulf %34, %38 : vector<10x32xf32>
    %40 = vector.broadcast %20 : vector<1x32xf32> to vector<10x32xf32>
    %41 = arith.mulf %39, %40 : vector<10x32xf32>
    %42 = vector.broadcast %21 : vector<1x32xf32> to vector<10x32xf32>
    %43 = arith.addf %41, %42 : vector<10x32xf32>
    %c0_31 = arith.constant 0 : index
    %c0_32 = arith.constant 0 : index
    %44 = vector.load %arg5[%c0_31, %c0_32] : memref<10x10xf32, #tpu.memory_space<vmem>>, vector<10x10xf32>
    %c0_33 = arith.constant 0 : index
    %c0_34 = arith.constant 0 : index
    %c0_35 = arith.constant 0 : index
    %45 = vector.load %arg8[%c0_33, %c0_34, %c0_35] : memref<2x1x32xf32, #tpu.memory_space<vmem>>, vector<1x1x32xf32>
    %46 = vector.shape_cast %45 : vector<1x1x32xf32> to vector<1x32xf32>
    %c0_36 = arith.constant 0 : index
    %c0_37 = arith.constant 0 : index
    %c0_38 = arith.constant 0 : index
    %47 = vector.load %arg9[%c0_36, %c0_37, %c0_38] : memref<2x1x32xf32, #tpu.memory_space<vmem>>, vector<1x1x32xf32>
    %48 = vector.shape_cast %47 : vector<1x1x32xf32> to vector<1x32xf32>
    %cst_39 = arith.constant dense<0.000000e+00> : vector<10xf32>
    %49 = vector.multi_reduction <add>, %43, %cst_39 [1] : vector<10x32xf32> to vector<10xf32>
    %50 = vector.shape_cast %49 : vector<10xf32> to vector<10x1xf32>
    %cst_40 = arith.constant 3.200000e+01 : f32
    %51 = vector.broadcast %cst_40 : f32 to vector<10x1xf32>
    %52 = arith.divf %50, %51 : vector<10x1xf32>
    %53 = vector.broadcast %52 : vector<10x1xf32> to vector<10x32xf32>
    %54 = arith.subf %43, %53 : vector<10x32xf32>
    %55 = arith.mulf %54, %54 : vector<10x32xf32>
    %cst_41 = arith.constant dense<0.000000e+00> : vector<10xf32>
    %56 = vector.multi_reduction <add>, %55, %cst_41 [1] : vector<10x32xf32> to vector<10xf32>
    %57 = vector.shape_cast %56 : vector<10xf32> to vector<10x1xf32>
    %cst_42 = arith.constant 3.200000e+01 : f32
    %58 = vector.broadcast %cst_42 : f32 to vector<10x1xf32>
    %59 = arith.divf %57, %58 : vector<10x1xf32>
    %60 = vector.broadcast %52 : vector<10x1xf32> to vector<10x32xf32>
    %61 = arith.subf %43, %60 : vector<10x32xf32>
    %cst_43 = arith.constant 9.99999974E-6 : f32
    %62 = vector.broadcast %cst_43 : f32 to vector<10x1xf32>
    %63 = arith.addf %59, %62 : vector<10x1xf32>
    %64 = math.rsqrt %63 : vector<10x1xf32>
    %65 = vector.broadcast %64 : vector<10x1xf32> to vector<10x32xf32>
    %66 = arith.mulf %61, %65 : vector<10x32xf32>
    %67 = vector.broadcast %46 : vector<1x32xf32> to vector<10x32xf32>
    %68 = arith.mulf %66, %67 : vector<10x32xf32>
    %69 = vector.broadcast %48 : vector<1x32xf32> to vector<10x32xf32>
    %70 = arith.addf %68, %69 : vector<10x32xf32>
    %c0_44 = arith.constant 0 : index
    %c0_45 = arith.constant 0 : index
    %c0_46 = arith.constant 0 : index
    %71 = vector.load %arg10[%c0_44, %c0_45, %c0_46] : memref<2x32x96xf32, #tpu.memory_space<vmem>>, vector<1x32x96xf32>
    %72 = vector.shape_cast %71 : vector<1x32x96xf32> to vector<32x96xf32>
    %cst_47 = arith.constant dense<0.000000e+00> : vector<10x96xf32>
    %73 = tpu.matmul %70, %72, %cst_47 {dimension_numbers = #tpu.dot_dimension_numbers<[1], [0], [0], [1], [0, 0, 1, 1], [], []>} : vector<10x32xf32>, vector<32x96xf32>, vector<10x96xf32> -> vector<10x96xf32>
    %c0_48 = arith.constant 0 : index
    %c0_49 = arith.constant 0 : index
    %c0_50 = arith.constant 0 : index
    %74 = vector.load %arg11[%c0_48, %c0_49, %c0_50] : memref<2x1x96xf32, #tpu.memory_space<vmem>>, vector<1x1x96xf32>
    %75 = vector.shape_cast %74 : vector<1x1x96xf32> to vector<1x96xf32>
    %76 = vector.broadcast %75 : vector<1x96xf32> to vector<10x96xf32>
    %77 = arith.addf %73, %76 : vector<10x96xf32>
    %c0_51 = arith.constant 0 : index
    %c0_52 = arith.constant 0 : index
    %c0_53 = arith.constant 0 : index
    %78 = vector.load %arg12[%c0_51, %c0_52, %c0_53] : memref<2x32x32xf32, #tpu.memory_space<vmem>>, vector<1x32x32xf32>
    %79 = vector.shape_cast %78 : vector<1x32x32xf32> to vector<32x32xf32>
    %cst_54 = arith.constant 0.000000e+00 : f32
    %80 = vector.broadcast %cst_54 : f32 to vector<10x32xf32>
    %81 = vector.extract_strided_slice %77 {offsets = [0, 0], sizes = [10, 16], strides = [1, 1]} : vector<10x96xf32> to vector<10x16xf32>
    %82 = vector.extract_strided_slice %77 {offsets = [0, 32], sizes = [10, 16], strides = [1, 1]} : vector<10x96xf32> to vector<10x16xf32>
    %83 = vector.extract_strided_slice %77 {offsets = [0, 64], sizes = [10, 16], strides = [1, 1]} : vector<10x96xf32> to vector<10x16xf32>
    %cst_55 = arith.constant dense<0.000000e+00> : vector<10x10xf32>
    %84 = tpu.matmul %81, %82, %cst_55 {dimension_numbers = #tpu.dot_dimension_numbers<[1], [1], [0], [0], [0, 0, 1, 0], [], []>} : vector<10x16xf32>, vector<10x16xf32>, vector<10x10xf32> -> vector<10x10xf32>
    %85 = arith.addf %84, %44 : vector<10x10xf32>
    %cst_56 = arith.constant dense<0xFF800000> : vector<10xf32>
    %86 = vector.multi_reduction <maximumf>, %85, %cst_56 [1] : vector<10x10xf32> to vector<10xf32>
    %87 = vector.shape_cast %86 : vector<10xf32> to vector<10x1xf32>
    %88 = vector.broadcast %87 : vector<10x1xf32> to vector<10x10xf32>
    %89 = arith.subf %85, %88 : vector<10x10xf32>
    %90 = math.exp %89 : vector<10x10xf32>
    %cst_57 = arith.constant dense<0.000000e+00> : vector<10xf32>
    %91 = vector.multi_reduction <add>, %90, %cst_57 [1] : vector<10x10xf32> to vector<10xf32>
    %92 = vector.shape_cast %91 : vector<10xf32> to vector<10x1xf32>
    %93 = tpu.reciprocal %92 {approx = true} : vector<10x1xf32> -> vector<10x1xf32>
    %94 = vector.broadcast %93 : vector<10x1xf32> to vector<10x10xf32>
    %95 = arith.mulf %90, %94 : vector<10x10xf32>
    %cst_58 = arith.constant dense<0.000000e+00> : vector<10x16xf32>
    %96 = tpu.matmul %95, %83, %cst_58 {dimension_numbers = #tpu.dot_dimension_numbers<[1], [0], [0], [1], [0, 0, 1, 1], [], []>} : vector<10x10xf32>, vector<10x16xf32>, vector<10x16xf32> -> vector<10x16xf32>
    %97 = vector.extract_strided_slice %79 {offsets = [0, 0], sizes = [16, 32], strides = [1, 1]} : vector<32x32xf32> to vector<16x32xf32>
    %cst_59 = arith.constant dense<0.000000e+00> : vector<10x32xf32>
    %98 = tpu.matmul %96, %97, %cst_59 {dimension_numbers = #tpu.dot_dimension_numbers<[1], [0], [0], [1], [0, 0, 1, 1], [], []>} : vector<10x16xf32>, vector<16x32xf32>, vector<10x32xf32> -> vector<10x32xf32>
    %99 = arith.addf %80, %98 : vector<10x32xf32>
    %100 = vector.extract_strided_slice %77 {offsets = [0, 16], sizes = [10, 16], strides = [1, 1]} : vector<10x96xf32> to vector<10x16xf32>
    %101 = vector.extract_strided_slice %77 {offsets = [0, 48], sizes = [10, 16], strides = [1, 1]} : vector<10x96xf32> to vector<10x16xf32>
    %102 = vector.extract_strided_slice %77 {offsets = [0, 80], sizes = [10, 16], strides = [1, 1]} : vector<10x96xf32> to vector<10x16xf32>
    %cst_60 = arith.constant dense<0.000000e+00> : vector<10x10xf32>
    %103 = tpu.matmul %100, %101, %cst_60 {dimension_numbers = #tpu.dot_dimension_numbers<[1], [1], [0], [0], [0, 0, 1, 0], [], []>} : vector<10x16xf32>, vector<10x16xf32>, vector<10x10xf32> -> vector<10x10xf32>
    %104 = arith.addf %103, %44 : vector<10x10xf32>
    %cst_61 = arith.constant dense<0xFF800000> : vector<10xf32>
    %105 = vector.multi_reduction <maximumf>, %104, %cst_61 [1] : vector<10x10xf32> to vector<10xf32>
    %106 = vector.shape_cast %105 : vector<10xf32> to vector<10x1xf32>
    %107 = vector.broadcast %106 : vector<10x1xf32> to vector<10x10xf32>
    %108 = arith.subf %104, %107 : vector<10x10xf32>
    %109 = math.exp %108 : vector<10x10xf32>
    %cst_62 = arith.constant dense<0.000000e+00> : vector<10xf32>
    %110 = vector.multi_reduction <add>, %109, %cst_62 [1] : vector<10x10xf32> to vector<10xf32>
    %111 = vector.shape_cast %110 : vector<10xf32> to vector<10x1xf32>
    %112 = tpu.reciprocal %111 {approx = true} : vector<10x1xf32> -> vector<10x1xf32>
    %113 = vector.broadcast %112 : vector<10x1xf32> to vector<10x10xf32>
    %114 = arith.mulf %109, %113 : vector<10x10xf32>
    %cst_63 = arith.constant dense<0.000000e+00> : vector<10x16xf32>
    %115 = tpu.matmul %114, %102, %cst_63 {dimension_numbers = #tpu.dot_dimension_numbers<[1], [0], [0], [1], [0, 0, 1, 1], [], []>} : vector<10x10xf32>, vector<10x16xf32>, vector<10x16xf32> -> vector<10x16xf32>
    %116 = vector.extract_strided_slice %79 {offsets = [16, 0], sizes = [16, 32], strides = [1, 1]} : vector<32x32xf32> to vector<16x32xf32>
    %cst_64 = arith.constant dense<0.000000e+00> : vector<10x32xf32>
    %117 = tpu.matmul %115, %116, %cst_64 {dimension_numbers = #tpu.dot_dimension_numbers<[1], [0], [0], [1], [0, 0, 1, 1], [], []>} : vector<10x16xf32>, vector<16x32xf32>, vector<10x32xf32> -> vector<10x32xf32>
    %118 = arith.addf %99, %117 : vector<10x32xf32>
    %119 = arith.addf %43, %118 : vector<10x32xf32>
    %c0_65 = arith.constant 0 : index
    %c0_66 = arith.constant 0 : index
    %c0_67 = arith.constant 0 : index
    %120 = vector.load %arg13[%c0_65, %c0_66, %c0_67] : memref<2x1x32xf32, #tpu.memory_space<vmem>>, vector<1x1x32xf32>
    %121 = vector.shape_cast %120 : vector<1x1x32xf32> to vector<1x32xf32>
    %122 = vector.broadcast %121 : vector<1x32xf32> to vector<10x32xf32>
    %123 = arith.addf %119, %122 : vector<10x32xf32>
    %c0_68 = arith.constant 0 : index
    %c0_69 = arith.constant 0 : index
    %c0_70 = arith.constant 0 : index
    %124 = vector.load %arg14[%c0_68, %c0_69, %c0_70] : memref<2x1x32xf32, #tpu.memory_space<vmem>>, vector<1x1x32xf32>
    %125 = vector.shape_cast %124 : vector<1x1x32xf32> to vector<1x32xf32>
    %c0_71 = arith.constant 0 : index
    %c0_72 = arith.constant 0 : index
    %c0_73 = arith.constant 0 : index
    %126 = vector.load %arg15[%c0_71, %c0_72, %c0_73] : memref<2x1x32xf32, #tpu.memory_space<vmem>>, vector<1x1x32xf32>
    %127 = vector.shape_cast %126 : vector<1x1x32xf32> to vector<1x32xf32>
    %cst_74 = arith.constant dense<0.000000e+00> : vector<10xf32>
    %128 = vector.multi_reduction <add>, %123, %cst_74 [1] : vector<10x32xf32> to vector<10xf32>
    %129 = vector.shape_cast %128 : vector<10xf32> to vector<10x1xf32>
    %cst_75 = arith.constant 3.200000e+01 : f32
    %130 = vector.broadcast %cst_75 : f32 to vector<10x1xf32>
    %131 = arith.divf %129, %130 : vector<10x1xf32>
    %132 = vector.broadcast %131 : vector<10x1xf32> to vector<10x32xf32>
    %133 = arith.subf %123, %132 : vector<10x32xf32>
    %134 = arith.mulf %133, %133 : vector<10x32xf32>
    %cst_76 = arith.constant dense<0.000000e+00> : vector<10xf32>
    %135 = vector.multi_reduction <add>, %134, %cst_76 [1] : vector<10x32xf32> to vector<10xf32>
    %136 = vector.shape_cast %135 : vector<10xf32> to vector<10x1xf32>
    %cst_77 = arith.constant 3.200000e+01 : f32
    %137 = vector.broadcast %cst_77 : f32 to vector<10x1xf32>
    %138 = arith.divf %136, %137 : vector<10x1xf32>
    %139 = vector.broadcast %131 : vector<10x1xf32> to vector<10x32xf32>
    %140 = arith.subf %123, %139 : vector<10x32xf32>
    %cst_78 = arith.constant 9.99999974E-6 : f32
    %141 = vector.broadcast %cst_78 : f32 to vector<10x1xf32>
    %142 = arith.addf %138, %141 : vector<10x1xf32>
    %143 = math.rsqrt %142 : vector<10x1xf32>
    %144 = vector.broadcast %143 : vector<10x1xf32> to vector<10x32xf32>
    %145 = arith.mulf %140, %144 : vector<10x32xf32>
    %146 = vector.broadcast %125 : vector<1x32xf32> to vector<10x32xf32>
    %147 = arith.mulf %145, %146 : vector<10x32xf32>
    %148 = vector.broadcast %127 : vector<1x32xf32> to vector<10x32xf32>
    %149 = arith.addf %147, %148 : vector<10x32xf32>
    %c0_79 = arith.constant 0 : index
    %c0_80 = arith.constant 0 : index
    %c0_81 = arith.constant 0 : index
    %150 = vector.load %arg16[%c0_79, %c0_80, %c0_81] : memref<2x32x128xf32, #tpu.memory_space<vmem>>, vector<1x32x128xf32>
    %151 = vector.shape_cast %150 : vector<1x32x128xf32> to vector<32x128xf32>
    %cst_82 = arith.constant dense<0.000000e+00> : vector<10x128xf32>
    %152 = tpu.matmul %149, %151, %cst_82 {dimension_numbers = #tpu.dot_dimension_numbers<[1], [0], [0], [1], [0, 0, 1, 1], [], []>} : vector<10x32xf32>, vector<32x128xf32>, vector<10x128xf32> -> vector<10x128xf32>
    %c0_83 = arith.constant 0 : index
    %c0_84 = arith.constant 0 : index
    %c0_85 = arith.constant 0 : index
    %153 = vector.load %arg17[%c0_83, %c0_84, %c0_85] : memref<2x1x128xf32, #tpu.memory_space<vmem>>, vector<1x1x128xf32>
    %154 = vector.shape_cast %153 : vector<1x1x128xf32> to vector<1x128xf32>
    %155 = vector.broadcast %154 : vector<1x128xf32> to vector<10x128xf32>
    %156 = arith.addf %152, %155 : vector<10x128xf32>
    %cst_86 = arith.constant 1.702000e+00 : f32
    %157 = vector.broadcast %cst_86 : f32 to vector<10x128xf32>
    %158 = arith.mulf %157, %156 : vector<10x128xf32>
    %159 = arith.negf %158 : vector<10x128xf32>
    %160 = math.exp %159 : vector<10x128xf32>
    %cst_87 = arith.constant 1.000000e+00 : f32
    %161 = vector.broadcast %cst_87 : f32 to vector<10x128xf32>
    %162 = arith.addf %161, %160 : vector<10x128xf32>
    %163 = arith.divf %161, %162 : vector<10x128xf32>
    %164 = arith.mulf %156, %163 : vector<10x128xf32>
    %c0_88 = arith.constant 0 : index
    %c0_89 = arith.constant 0 : index
    %c0_90 = arith.constant 0 : index
    %165 = vector.load %arg18[%c0_88, %c0_89, %c0_90] : memref<2x128x32xf32, #tpu.memory_space<vmem>>, vector<1x128x32xf32>
    %166 = vector.shape_cast %165 : vector<1x128x32xf32> to vector<128x32xf32>
    %cst_91 = arith.constant dense<0.000000e+00> : vector<10x32xf32>
    %167 = tpu.matmul %164, %166, %cst_91 {dimension_numbers = #tpu.dot_dimension_numbers<[1], [0], [0], [1], [0, 0, 1, 1], [], []>} : vector<10x128xf32>, vector<128x32xf32>, vector<10x32xf32> -> vector<10x32xf32>
    %168 = arith.addf %123, %167 : vector<10x32xf32>
    %c0_92 = arith.constant 0 : index
    %c0_93 = arith.constant 0 : index
    %c0_94 = arith.constant 0 : index
    %169 = vector.load %arg19[%c0_92, %c0_93, %c0_94] : memref<2x1x32xf32, #tpu.memory_space<vmem>>, vector<1x1x32xf32>
    %170 = vector.shape_cast %169 : vector<1x1x32xf32> to vector<1x32xf32>
    %171 = vector.broadcast %170 : vector<1x32xf32> to vector<10x32xf32>
    %172 = arith.addf %168, %171 : vector<10x32xf32>
    %c1_95 = arith.constant 1 : index
    %c0_96 = arith.constant 0 : index
    %c0_97 = arith.constant 0 : index
    %173 = vector.load %arg8[%c1_95, %c0_96, %c0_97] : memref<2x1x32xf32, #tpu.memory_space<vmem>>, vector<1x1x32xf32>
    %174 = vector.shape_cast %173 : vector<1x1x32xf32> to vector<1x32xf32>
    %c1_98 = arith.constant 1 : index
    %c0_99 = arith.constant 0 : index
    %c0_100 = arith.constant 0 : index
    %175 = vector.load %arg9[%c1_98, %c0_99, %c0_100] : memref<2x1x32xf32, #tpu.memory_space<vmem>>, vector<1x1x32xf32>
    %176 = vector.shape_cast %175 : vector<1x1x32xf32> to vector<1x32xf32>
    %cst_101 = arith.constant dense<0.000000e+00> : vector<10xf32>
    %177 = vector.multi_reduction <add>, %172, %cst_101 [1] : vector<10x32xf32> to vector<10xf32>
    %178 = vector.shape_cast %177 : vector<10xf32> to vector<10x1xf32>
    %cst_102 = arith.constant 3.200000e+01 : f32
    %179 = vector.broadcast %cst_102 : f32 to vector<10x1xf32>
    %180 = arith.divf %178, %179 : vector<10x1xf32>
    %181 = vector.broadcast %180 : vector<10x1xf32> to vector<10x32xf32>
    %182 = arith.subf %172, %181 : vector<10x32xf32>
    %183 = arith.mulf %182, %182 : vector<10x32xf32>
    %cst_103 = arith.constant dense<0.000000e+00> : vector<10xf32>
    %184 = vector.multi_reduction <add>, %183, %cst_103 [1] : vector<10x32xf32> to vector<10xf32>
    %185 = vector.shape_cast %184 : vector<10xf32> to vector<10x1xf32>
    %cst_104 = arith.constant 3.200000e+01 : f32
    %186 = vector.broadcast %cst_104 : f32 to vector<10x1xf32>
    %187 = arith.divf %185, %186 : vector<10x1xf32>
    %188 = vector.broadcast %180 : vector<10x1xf32> to vector<10x32xf32>
    %189 = arith.subf %172, %188 : vector<10x32xf32>
    %cst_105 = arith.constant 9.99999974E-6 : f32
    %190 = vector.broadcast %cst_105 : f32 to vector<10x1xf32>
    %191 = arith.addf %187, %190 : vector<10x1xf32>
    %192 = math.rsqrt %191 : vector<10x1xf32>
    %193 = vector.broadcast %192 : vector<10x1xf32> to vector<10x32xf32>
    %194 = arith.mulf %189, %193 : vector<10x32xf32>
    %195 = vector.broadcast %174 : vector<1x32xf32> to vector<10x32xf32>
    %196 = arith.mulf %194, %195 : vector<10x32xf32>
    %197 = vector.broadcast %176 : vector<1x32xf32> to vector<10x32xf32>
    %198 = arith.addf %196, %197 : vector<10x32xf32>
    %c1_106 = arith.constant 1 : index
    %c0_107 = arith.constant 0 : index
    %c0_108 = arith.constant 0 : index
    %199 = vector.load %arg10[%c1_106, %c0_107, %c0_108] : memref<2x32x96xf32, #tpu.memory_space<vmem>>, vector<1x32x96xf32>
    %200 = vector.shape_cast %199 : vector<1x32x96xf32> to vector<32x96xf32>
    %cst_109 = arith.constant dense<0.000000e+00> : vector<10x96xf32>
    %201 = tpu.matmul %198, %200, %cst_109 {dimension_numbers = #tpu.dot_dimension_numbers<[1], [0], [0], [1], [0, 0, 1, 1], [], []>} : vector<10x32xf32>, vector<32x96xf32>, vector<10x96xf32> -> vector<10x96xf32>
    %c1_110 = arith.constant 1 : index
    %c0_111 = arith.constant 0 : index
    %c0_112 = arith.constant 0 : index
    %202 = vector.load %arg11[%c1_110, %c0_111, %c0_112] : memref<2x1x96xf32, #tpu.memory_space<vmem>>, vector<1x1x96xf32>
    %203 = vector.shape_cast %202 : vector<1x1x96xf32> to vector<1x96xf32>
    %204 = vector.broadcast %203 : vector<1x96xf32> to vector<10x96xf32>
    %205 = arith.addf %201, %204 : vector<10x96xf32>
    %c1_113 = arith.constant 1 : index
    %c0_114 = arith.constant 0 : index
    %c0_115 = arith.constant 0 : index
    %206 = vector.load %arg12[%c1_113, %c0_114, %c0_115] : memref<2x32x32xf32, #tpu.memory_space<vmem>>, vector<1x32x32xf32>
    %207 = vector.shape_cast %206 : vector<1x32x32xf32> to vector<32x32xf32>
    %cst_116 = arith.constant 0.000000e+00 : f32
    %208 = vector.broadcast %cst_116 : f32 to vector<10x32xf32>
    %209 = vector.extract_strided_slice %205 {offsets = [0, 0], sizes = [10, 16], strides = [1, 1]} : vector<10x96xf32> to vector<10x16xf32>
    %210 = vector.extract_strided_slice %205 {offsets = [0, 32], sizes = [10, 16], strides = [1, 1]} : vector<10x96xf32> to vector<10x16xf32>
    %211 = vector.extract_strided_slice %205 {offsets = [0, 64], sizes = [10, 16], strides = [1, 1]} : vector<10x96xf32> to vector<10x16xf32>
    %cst_117 = arith.constant dense<0.000000e+00> : vector<10x10xf32>
    %212 = tpu.matmul %209, %210, %cst_117 {dimension_numbers = #tpu.dot_dimension_numbers<[1], [1], [0], [0], [0, 0, 1, 0], [], []>} : vector<10x16xf32>, vector<10x16xf32>, vector<10x10xf32> -> vector<10x10xf32>
    %213 = arith.addf %212, %44 : vector<10x10xf32>
    %cst_118 = arith.constant dense<0xFF800000> : vector<10xf32>
    %214 = vector.multi_reduction <maximumf>, %213, %cst_118 [1] : vector<10x10xf32> to vector<10xf32>
    %215 = vector.shape_cast %214 : vector<10xf32> to vector<10x1xf32>
    %216 = vector.broadcast %215 : vector<10x1xf32> to vector<10x10xf32>
    %217 = arith.subf %213, %216 : vector<10x10xf32>
    %218 = math.exp %217 : vector<10x10xf32>
    %cst_119 = arith.constant dense<0.000000e+00> : vector<10xf32>
    %219 = vector.multi_reduction <add>, %218, %cst_119 [1] : vector<10x10xf32> to vector<10xf32>
    %220 = vector.shape_cast %219 : vector<10xf32> to vector<10x1xf32>
    %221 = tpu.reciprocal %220 {approx = true} : vector<10x1xf32> -> vector<10x1xf32>
    %222 = vector.broadcast %221 : vector<10x1xf32> to vector<10x10xf32>
    %223 = arith.mulf %218, %222 : vector<10x10xf32>
    %cst_120 = arith.constant dense<0.000000e+00> : vector<10x16xf32>
    %224 = tpu.matmul %223, %211, %cst_120 {dimension_numbers = #tpu.dot_dimension_numbers<[1], [0], [0], [1], [0, 0, 1, 1], [], []>} : vector<10x10xf32>, vector<10x16xf32>, vector<10x16xf32> -> vector<10x16xf32>
    %225 = vector.extract_strided_slice %207 {offsets = [0, 0], sizes = [16, 32], strides = [1, 1]} : vector<32x32xf32> to vector<16x32xf32>
    %cst_121 = arith.constant dense<0.000000e+00> : vector<10x32xf32>
    %226 = tpu.matmul %224, %225, %cst_121 {dimension_numbers = #tpu.dot_dimension_numbers<[1], [0], [0], [1], [0, 0, 1, 1], [], []>} : vector<10x16xf32>, vector<16x32xf32>, vector<10x32xf32> -> vector<10x32xf32>
    %227 = arith.addf %208, %226 : vector<10x32xf32>
    %228 = vector.extract_strided_slice %205 {offsets = [0, 16], sizes = [10, 16], strides = [1, 1]} : vector<10x96xf32> to vector<10x16xf32>
    %229 = vector.extract_strided_slice %205 {offsets = [0, 48], sizes = [10, 16], strides = [1, 1]} : vector<10x96xf32> to vector<10x16xf32>
    %230 = vector.extract_strided_slice %205 {offsets = [0, 80], sizes = [10, 16], strides = [1, 1]} : vector<10x96xf32> to vector<10x16xf32>
    %cst_122 = arith.constant dense<0.000000e+00> : vector<10x10xf32>
    %231 = tpu.matmul %228, %229, %cst_122 {dimension_numbers = #tpu.dot_dimension_numbers<[1], [1], [0], [0], [0, 0, 1, 0], [], []>} : vector<10x16xf32>, vector<10x16xf32>, vector<10x10xf32> -> vector<10x10xf32>
    %232 = arith.addf %231, %44 : vector<10x10xf32>
    %cst_123 = arith.constant dense<0xFF800000> : vector<10xf32>
    %233 = vector.multi_reduction <maximumf>, %232, %cst_123 [1] : vector<10x10xf32> to vector<10xf32>
    %234 = vector.shape_cast %233 : vector<10xf32> to vector<10x1xf32>
    %235 = vector.broadcast %234 : vector<10x1xf32> to vector<10x10xf32>
    %236 = arith.subf %232, %235 : vector<10x10xf32>
    %237 = math.exp %236 : vector<10x10xf32>
    %cst_124 = arith.constant dense<0.000000e+00> : vector<10xf32>
    %238 = vector.multi_reduction <add>, %237, %cst_124 [1] : vector<10x10xf32> to vector<10xf32>
    %239 = vector.shape_cast %238 : vector<10xf32> to vector<10x1xf32>
    %240 = tpu.reciprocal %239 {approx = true} : vector<10x1xf32> -> vector<10x1xf32>
    %241 = vector.broadcast %240 : vector<10x1xf32> to vector<10x10xf32>
    %242 = arith.mulf %237, %241 : vector<10x10xf32>
    %cst_125 = arith.constant dense<0.000000e+00> : vector<10x16xf32>
    %243 = tpu.matmul %242, %230, %cst_125 {dimension_numbers = #tpu.dot_dimension_numbers<[1], [0], [0], [1], [0, 0, 1, 1], [], []>} : vector<10x10xf32>, vector<10x16xf32>, vector<10x16xf32> -> vector<10x16xf32>
    %244 = vector.extract_strided_slice %207 {offsets = [16, 0], sizes = [16, 32], strides = [1, 1]} : vector<32x32xf32> to vector<16x32xf32>
    %cst_126 = arith.constant dense<0.000000e+00> : vector<10x32xf32>
    %245 = tpu.matmul %243, %244, %cst_126 {dimension_numbers = #tpu.dot_dimension_numbers<[1], [0], [0], [1], [0, 0, 1, 1], [], []>} : vector<10x16xf32>, vector<16x32xf32>, vector<10x32xf32> -> vector<10x32xf32>
    %246 = arith.addf %227, %245 : vector<10x32xf32>
    %247 = arith.addf %172, %246 : vector<10x32xf32>
    %c1_127 = arith.constant 1 : index
    %c0_128 = arith.constant 0 : index
    %c0_129 = arith.constant 0 : index
    %248 = vector.load %arg13[%c1_127, %c0_128, %c0_129] : memref<2x1x32xf32, #tpu.memory_space<vmem>>, vector<1x1x32xf32>
    %249 = vector.shape_cast %248 : vector<1x1x32xf32> to vector<1x32xf32>
    %250 = vector.broadcast %249 : vector<1x32xf32> to vector<10x32xf32>
    %251 = arith.addf %247, %250 : vector<10x32xf32>
    %c1_130 = arith.constant 1 : index
    %c0_131 = arith.constant 0 : index
    %c0_132 = arith.constant 0 : index
    %252 = vector.load %arg14[%c1_130, %c0_131, %c0_132] : memref<2x1x32xf32, #tpu.memory_space<vmem>>, vector<1x1x32xf32>
    %253 = vector.shape_cast %252 : vector<1x1x32xf32> to vector<1x32xf32>
    %c1_133 = arith.constant 1 : index
    %c0_134 = arith.constant 0 : index
    %c0_135 = arith.constant 0 : index
    %254 = vector.load %arg15[%c1_133, %c0_134, %c0_135] : memref<2x1x32xf32, #tpu.memory_space<vmem>>, vector<1x1x32xf32>
    %255 = vector.shape_cast %254 : vector<1x1x32xf32> to vector<1x32xf32>
    %cst_136 = arith.constant dense<0.000000e+00> : vector<10xf32>
    %256 = vector.multi_reduction <add>, %251, %cst_136 [1] : vector<10x32xf32> to vector<10xf32>
    %257 = vector.shape_cast %256 : vector<10xf32> to vector<10x1xf32>
    %cst_137 = arith.constant 3.200000e+01 : f32
    %258 = vector.broadcast %cst_137 : f32 to vector<10x1xf32>
    %259 = arith.divf %257, %258 : vector<10x1xf32>
    %260 = vector.broadcast %259 : vector<10x1xf32> to vector<10x32xf32>
    %261 = arith.subf %251, %260 : vector<10x32xf32>
    %262 = arith.mulf %261, %261 : vector<10x32xf32>
    %cst_138 = arith.constant dense<0.000000e+00> : vector<10xf32>
    %263 = vector.multi_reduction <add>, %262, %cst_138 [1] : vector<10x32xf32> to vector<10xf32>
    %264 = vector.shape_cast %263 : vector<10xf32> to vector<10x1xf32>
    %cst_139 = arith.constant 3.200000e+01 : f32
    %265 = vector.broadcast %cst_139 : f32 to vector<10x1xf32>
    %266 = arith.divf %264, %265 : vector<10x1xf32>
    %267 = vector.broadcast %259 : vector<10x1xf32> to vector<10x32xf32>
    %268 = arith.subf %251, %267 : vector<10x32xf32>
    %cst_140 = arith.constant 9.99999974E-6 : f32
    %269 = vector.broadcast %cst_140 : f32 to vector<10x1xf32>
    %270 = arith.addf %266, %269 : vector<10x1xf32>
    %271 = math.rsqrt %270 : vector<10x1xf32>
    %272 = vector.broadcast %271 : vector<10x1xf32> to vector<10x32xf32>
    %273 = arith.mulf %268, %272 : vector<10x32xf32>
    %274 = vector.broadcast %253 : vector<1x32xf32> to vector<10x32xf32>
    %275 = arith.mulf %273, %274 : vector<10x32xf32>
    %276 = vector.broadcast %255 : vector<1x32xf32> to vector<10x32xf32>
    %277 = arith.addf %275, %276 : vector<10x32xf32>
    %c1_141 = arith.constant 1 : index
    %c0_142 = arith.constant 0 : index
    %c0_143 = arith.constant 0 : index
    %278 = vector.load %arg16[%c1_141, %c0_142, %c0_143] : memref<2x32x128xf32, #tpu.memory_space<vmem>>, vector<1x32x128xf32>
    %279 = vector.shape_cast %278 : vector<1x32x128xf32> to vector<32x128xf32>
    %cst_144 = arith.constant dense<0.000000e+00> : vector<10x128xf32>
    %280 = tpu.matmul %277, %279, %cst_144 {dimension_numbers = #tpu.dot_dimension_numbers<[1], [0], [0], [1], [0, 0, 1, 1], [], []>} : vector<10x32xf32>, vector<32x128xf32>, vector<10x128xf32> -> vector<10x128xf32>
    %c1_145 = arith.constant 1 : index
    %c0_146 = arith.constant 0 : index
    %c0_147 = arith.constant 0 : index
    %281 = vector.load %arg17[%c1_145, %c0_146, %c0_147] : memref<2x1x128xf32, #tpu.memory_space<vmem>>, vector<1x1x128xf32>
    %282 = vector.shape_cast %281 : vector<1x1x128xf32> to vector<1x128xf32>
    %283 = vector.broadcast %282 : vector<1x128xf32> to vector<10x128xf32>
    %284 = arith.addf %280, %283 : vector<10x128xf32>
    %cst_148 = arith.constant 1.702000e+00 : f32
    %285 = vector.broadcast %cst_148 : f32 to vector<10x128xf32>
    %286 = arith.mulf %285, %284 : vector<10x128xf32>
    %287 = arith.negf %286 : vector<10x128xf32>
    %288 = math.exp %287 : vector<10x128xf32>
    %cst_149 = arith.constant 1.000000e+00 : f32
    %289 = vector.broadcast %cst_149 : f32 to vector<10x128xf32>
    %290 = arith.addf %289, %288 : vector<10x128xf32>
    %291 = arith.divf %289, %290 : vector<10x128xf32>
    %292 = arith.mulf %284, %291 : vector<10x128xf32>
    %c1_150 = arith.constant 1 : index
    %c0_151 = arith.constant 0 : index
    %c0_152 = arith.constant 0 : index
    %293 = vector.load %arg18[%c1_150, %c0_151, %c0_152] : memref<2x128x32xf32, #tpu.memory_space<vmem>>, vector<1x128x32xf32>
    %294 = vector.shape_cast %293 : vector<1x128x32xf32> to vector<128x32xf32>
    %cst_153 = arith.constant dense<0.000000e+00> : vector<10x32xf32>
    %295 = tpu.matmul %292, %294, %cst_153 {dimension_numbers = #tpu.dot_dimension_numbers<[1], [0], [0], [1], [0, 0, 1, 1], [], []>} : vector<10x128xf32>, vector<128x32xf32>, vector<10x32xf32> -> vector<10x32xf32>
    %296 = arith.addf %251, %295 : vector<10x32xf32>
    %c1_154 = arith.constant 1 : index
    %c0_155 = arith.constant 0 : index
    %c0_156 = arith.constant 0 : index
    %297 = vector.load %arg19[%c1_154, %c0_155, %c0_156] : memref<2x1x32xf32, #tpu.memory_space<vmem>>, vector<1x1x32xf32>
    %298 = vector.shape_cast %297 : vector<1x1x32xf32> to vector<1x32xf32>
    %299 = vector.broadcast %298 : vector<1x32xf32> to vector<10x32xf32>
    %300 = arith.addf %296, %299 : vector<10x32xf32>
    %c0_157 = arith.constant 0 : index
    %c0_158 = arith.constant 0 : index
    %301 = vector.load %arg20[%c0_157, %c0_158] : memref<1x32xf32, #tpu.memory_space<vmem>>, vector<1x32xf32>
    %c0_159 = arith.constant 0 : index
    %c0_160 = arith.constant 0 : index
    %302 = vector.load %arg21[%c0_159, %c0_160] : memref<1x32xf32, #tpu.memory_space<vmem>>, vector<1x32xf32>
    %cst_161 = arith.constant dense<0.000000e+00> : vector<10xf32>
    %303 = vector.multi_reduction <add>, %300, %cst_161 [1] : vector<10x32xf32> to vector<10xf32>
    %304 = vector.shape_cast %303 : vector<10xf32> to vector<10x1xf32>
    %cst_162 = arith.constant 3.200000e+01 : f32
    %305 = vector.broadcast %cst_162 : f32 to vector<10x1xf32>
    %306 = arith.divf %304, %305 : vector<10x1xf32>
    %307 = vector.broadcast %306 : vector<10x1xf32> to vector<10x32xf32>
    %308 = arith.subf %300, %307 : vector<10x32xf32>
    %309 = arith.mulf %308, %308 : vector<10x32xf32>
    %cst_163 = arith.constant dense<0.000000e+00> : vector<10xf32>
    %310 = vector.multi_reduction <add>, %309, %cst_163 [1] : vector<10x32xf32> to vector<10xf32>
    %311 = vector.shape_cast %310 : vector<10xf32> to vector<10x1xf32>
    %cst_164 = arith.constant 3.200000e+01 : f32
    %312 = vector.broadcast %cst_164 : f32 to vector<10x1xf32>
    %313 = arith.divf %311, %312 : vector<10x1xf32>
    %314 = vector.broadcast %306 : vector<10x1xf32> to vector<10x32xf32>
    %315 = arith.subf %300, %314 : vector<10x32xf32>
    %cst_165 = arith.constant 9.99999974E-6 : f32
    %316 = vector.broadcast %cst_165 : f32 to vector<10x1xf32>
    %317 = arith.addf %313, %316 : vector<10x1xf32>
    %318 = math.rsqrt %317 : vector<10x1xf32>
    %319 = vector.broadcast %318 : vector<10x1xf32> to vector<10x32xf32>
    %320 = arith.mulf %315, %319 : vector<10x32xf32>
    %321 = vector.broadcast %301 : vector<1x32xf32> to vector<10x32xf32>
    %322 = arith.mulf %320, %321 : vector<10x32xf32>
    %323 = vector.broadcast %302 : vector<1x32xf32> to vector<10x32xf32>
    %324 = arith.addf %322, %323 : vector<10x32xf32>
    %c0_166 = arith.constant 0 : index
    %c0_167 = arith.constant 0 : index
    %325 = vector.load %arg22[%c0_166, %c0_167] : memref<32x16xf32, #tpu.memory_space<vmem>>, vector<32x16xf32>
    %cst_168 = arith.constant dense<0.000000e+00> : vector<10x16xf32>
    %326 = tpu.matmul %324, %325, %cst_168 {dimension_numbers = #tpu.dot_dimension_numbers<[1], [0], [0], [1], [0, 0, 1, 1], [], []>} : vector<10x32xf32>, vector<32x16xf32>, vector<10x16xf32> -> vector<10x16xf32>
    %327 = vector.extract_strided_slice %326 {offsets = [0, 0], sizes = [1, 16], strides = [1, 1]} : vector<10x16xf32> to vector<1x16xf32>
    %c0_169 = arith.constant 0 : index
    %c0_170 = arith.constant 0 : index
    %328 = vector.load %arg23[%c0_169, %c0_170] : memref<2x16xf32, #tpu.memory_space<vmem>>, vector<1x16xf32>
    tpu.vector_store %arg23[%c0_169, %c0_170], %327 {strides = array<i32>} : memref<2x16xf32, #tpu.memory_space<vmem>>, vector<1x16xf32>,
    %329 = vector.extract_strided_slice %326 {offsets = [5, 0], sizes = [1, 16], strides = [1, 1]} : vector<10x16xf32> to vector<1x16xf32>
    %c1_171 = arith.constant 1 : index
    %c0_172 = arith.constant 0 : index
    %330 = vector.load %arg23[%c1_171, %c0_172] : memref<2x16xf32, #tpu.memory_space<vmem>>, vector<1x16xf32>
    tpu.vector_store %arg23[%c1_171, %c0_172], %329 {strides = array<i32>} : memref<2x16xf32, #tpu.memory_space<vmem>>, vector<1x16xf32>,
    return
  }
  func.func @transform_0(%arg0: i32) -> (i32, i32) {
    %c0_i32 = arith.constant 0 : i32
    %c0_i32_0 = arith.constant 0 : i32
    %c0_i32_1 = arith.constant 0 : i32
    return %c0_i32, %c0_i32_0 : i32, i32
  }
  func.func @transform_1(%arg0: i32) -> (i32, i32) {
    %c0_i32 = arith.constant 0 : i32
    %c0_i32_0 = arith.constant 0 : i32
    %c0_i32_1 = arith.constant 0 : i32
    return %c0_i32, %c0_i32_0 : i32, i32
  }
  func.func @transform_2(%arg0: i32) -> (i32, i32) {
    %c0_i32 = arith.constant 0 : i32
    %c0_i32_0 = arith.constant 0 : i32
    %c0_i32_1 = arith.constant 0 : i32
    return %c0_i32, %c0_i32_0 : i32, i32
  }
  func.func @transform_3(%arg0: i32) -> (i32, i32) {
    %c0_i32 = arith.constant 0 : i32
    %c0_i32_0 = arith.constant 0 : i32
    %c0_i32_1 = arith.constant 0 : i32
    return %c0_i32, %c0_i32_0 : i32, i32
  }
  func.func @transform_4(%arg0: i32) -> (i32, i32) {
    %c0_i32 = arith.constant 0 : i32
    %c0_i32_0 = arith.constant 0 : i32
    %c0_i32_1 = arith.constant 0 : i32
    return %c0_i32, %c0_i32_0 : i32, i32
  }
  func.func @transform_5(%arg0: i32) -> (i32, i32) {
    %c0_i32 = arith.constant 0 : i32
    %c0_i32_0 = arith.constant 0 : i32
    %c0_i32_1 = arith.constant 0 : i32
    return %c0_i32, %c0_i32_0 : i32, i32
  }
  func.func @transform_6(%arg0: i32) -> (i32, i32) {
    %c0_i32 = arith.constant 0 : i32
    %c0_i32_0 = arith.constant 0 : i32
    %c0_i32_1 = arith.constant 0 : i32
    return %c0_i32, %c0_i32_0 : i32, i32
  }
  func.func @transform_7(%arg0: i32) -> (i32, i32, i32) {
    %c0_i32 = arith.constant 0 : i32
    %c0_i32_0 = arith.constant 0 : i32
    %c0_i32_1 = arith.constant 0 : i32
    %c0_i32_2 = arith.constant 0 : i32
    return %c0_i32, %c0_i32_0, %c0_i32_1 : i32, i32, i32
  }
  func.func @transform_8(%arg0: i32) -> (i32, i32, i32) {
    %c0_i32 = arith.constant 0 : i32
    %c0_i32_0 = arith.constant 0 : i32
    %c0_i32_1 = arith.constant 0 : i32
    %c0_i32_2 = arith.constant 0 : i32
    return %c0_i32, %c0_i32_0, %c0_i32_1 : i32, i32, i32
  }
  func.func @transform_9(%arg0: i32) -> (i32, i32, i32) {
    %c0_i32 = arith.constant 0 : i32
    %c0_i32_0 = arith.constant 0 : i32
    %c0_i32_1 = arith.constant 0 : i32
    %c0_i32_2 = arith.constant 0 : i32
    return %c0_i32, %c0_i32_0, %c0_i32_1 : i32, i32, i32
  }
  func.func @transform_10(%arg0: i32) -> (i32, i32, i32) {
    %c0_i32 = arith.constant 0 : i32
    %c0_i32_0 = arith.constant 0 : i32
    %c0_i32_1 = arith.constant 0 : i32
    %c0_i32_2 = arith.constant 0 : i32
    return %c0_i32, %c0_i32_0, %c0_i32_1 : i32, i32, i32
  }
  func.func @transform_11(%arg0: i32) -> (i32, i32, i32) {
    %c0_i32 = arith.constant 0 : i32
    %c0_i32_0 = arith.constant 0 : i32
    %c0_i32_1 = arith.constant 0 : i32
    %c0_i32_2 = arith.constant 0 : i32
    return %c0_i32, %c0_i32_0, %c0_i32_1 : i32, i32, i32
  }
  func.func @transform_12(%arg0: i32) -> (i32, i32, i32) {
    %c0_i32 = arith.constant 0 : i32
    %c0_i32_0 = arith.constant 0 : i32
    %c0_i32_1 = arith.constant 0 : i32
    %c0_i32_2 = arith.constant 0 : i32
    return %c0_i32, %c0_i32_0, %c0_i32_1 : i32, i32, i32
  }
  func.func @transform_13(%arg0: i32) -> (i32, i32, i32) {
    %c0_i32 = arith.constant 0 : i32
    %c0_i32_0 = arith.constant 0 : i32
    %c0_i32_1 = arith.constant 0 : i32
    %c0_i32_2 = arith.constant 0 : i32
    return %c0_i32, %c0_i32_0, %c0_i32_1 : i32, i32, i32
  }
  func.func @transform_14(%arg0: i32) -> (i32, i32, i32) {
    %c0_i32 = arith.constant 0 : i32
    %c0_i32_0 = arith.constant 0 : i32
    %c0_i32_1 = arith.constant 0 : i32
    %c0_i32_2 = arith.constant 0 : i32
    return %c0_i32, %c0_i32_0, %c0_i32_1 : i32, i32, i32
  }
  func.func @transform_15(%arg0: i32) -> (i32, i32, i32) {
    %c0_i32 = arith.constant 0 : i32
    %c0_i32_0 = arith.constant 0 : i32
    %c0_i32_1 = arith.constant 0 : i32
    %c0_i32_2 = arith.constant 0 : i32
    return %c0_i32, %c0_i32_0, %c0_i32_1 : i32, i32, i32
  }
  func.func @transform_16(%arg0: i32) -> (i32, i32, i32) {
    %c0_i32 = arith.constant 0 : i32
    %c0_i32_0 = arith.constant 0 : i32
    %c0_i32_1 = arith.constant 0 : i32
    %c0_i32_2 = arith.constant 0 : i32
    return %c0_i32, %c0_i32_0, %c0_i32_1 : i32, i32, i32
  }
  func.func @transform_17(%arg0: i32) -> (i32, i32, i32) {
    %c0_i32 = arith.constant 0 : i32
    %c0_i32_0 = arith.constant 0 : i32
    %c0_i32_1 = arith.constant 0 : i32
    %c0_i32_2 = arith.constant 0 : i32
    return %c0_i32, %c0_i32_0, %c0_i32_1 : i32, i32, i32
  }
  func.func @transform_18(%arg0: i32) -> (i32, i32, i32) {
    %c0_i32 = arith.constant 0 : i32
    %c0_i32_0 = arith.constant 0 : i32
    %c0_i32_1 = arith.constant 0 : i32
    %c0_i32_2 = arith.constant 0 : i32
    return %c0_i32, %c0_i32_0, %c0_i32_1 : i32, i32, i32
  }
  func.func @transform_19(%arg0: i32) -> (i32, i32) {
    %c0_i32 = arith.constant 0 : i32
    %c0_i32_0 = arith.constant 0 : i32
    %c0_i32_1 = arith.constant 0 : i32
    return %c0_i32, %c0_i32_0 : i32, i32
  }
  func.func @transform_20(%arg0: i32) -> (i32, i32) {
    %c0_i32 = arith.constant 0 : i32
    %c0_i32_0 = arith.constant 0 : i32
    %c0_i32_1 = arith.constant 0 : i32
    return %c0_i32, %c0_i32_0 : i32, i32
  }
  func.func @transform_21(%arg0: i32) -> (i32, i32) {
    %c0_i32 = arith.constant 0 : i32
    %c0_i32_0 = arith.constant 0 : i32
    %c0_i32_1 = arith.constant 0 : i32
    return %c0_i32, %c0_i32_0 : i32, i32
  }
  func.func @transform_22(%arg0: i32) -> (i32, i32) {
    %c0_i32 = arith.constant 0 : i32
    %c0_i32_0 = arith.constant 0 : i32
    %c0_i32_1 = arith.constant 0 : i32
    return %c0_i32, %c0_i32_0 : i32, i32
  }
}

</mosaic_0001>

<llo_original>
// kernel: encode_image.1
$region0: #{encode_image.1}
  #allocation0 [shape = 'u32[]', space=smem, size = 0x4, offset = 0x4, fixed_abs, tag = 'smem constant byte address 0x4 - core index']
  #allocation1 [shape = 'u32[72,128]{1,0:T(1,128)}', space=vmem, size = 0x9000, scoped, tag = 'internal scratch']
  #allocation2 [shape = 'f32[10,32]{1,0:T(8,128)}', space=vmem, size = 0x2000, scoped, tag = 'scratch operand']
  %s0 = inlined_call_operand.vmem [shape: f32[8,192], index: 0, kind: input, shape index: {}]
  %s1 = inlined_call_operand.vmem [shape: f32[192,32], index: 1, kind: input, shape index: {}]
  %s2 = inlined_call_operand.vmem [shape: f32[1,32], index: 2, kind: input, shape index: {}]
  %s3 = inlined_call_operand.vmem [shape: f32[5,32], index: 3, kind: input, shape index: {}]
  %s4 = inlined_call_operand.vmem [shape: f32[10,10], index: 4, kind: input, shape index: {}]
  %s5 = inlined_call_operand.vmem [shape: f32[1,32], index: 5, kind: input, shape index: {}]
  %s6 = inlined_call_operand.vmem [shape: f32[1,32], index: 6, kind: input, shape index: {}]
  %s7 = inlined_call_operand.vmem [shape: f32[2,1,32], index: 7, kind: input, shape index: {}]
  %s8 = inlined_call_operand.vmem [shape: f32[2,1,32], index: 8, kind: input, shape index: {}]
  %s9 = inlined_call_operand.vmem [shape: f32[2,32,96], index: 9, kind: input, shape index: {}]
  %s10 = inlined_call_operand.vmem [shape: f32[2,1,96], index: 10, kind: input, shape index: {}]
  %s11 = inlined_call_operand.vmem [shape: f32[2,32,32], index: 11, kind: input, shape index: {}]
  %s12 = inlined_call_operand.vmem [shape: f32[2,1,32], index: 12, kind: input, shape index: {}]
  %s13 = inlined_call_operand.vmem [shape: f32[2,1,32], index: 13, kind: input, shape index: {}]
  %s14 = inlined_call_operand.vmem [shape: f32[2,1,32], index: 14, kind: input, shape index: {}]
  %s15 = inlined_call_operand.vmem [shape: f32[2,32,128], index: 15, kind: input, shape index: {}]
  %s16 = inlined_call_operand.vmem [shape: f32[2,1,128], index: 16, kind: input, shape index: {}]
  %s17 = inlined_call_operand.vmem [shape: f32[2,128,32], index: 17, kind: input, shape index: {}]
  %s18 = inlined_call_operand.vmem [shape: f32[2,1,32], index: 18, kind: input, shape index: {}]
  %s19 = inlined_call_operand.vmem [shape: f32[1,32], index: 19, kind: input, shape index: {}]
  %s20 = inlined_call_operand.vmem [shape: f32[1,32], index: 20, kind: input, shape index: {}]
  %s21 = inlined_call_operand.vmem [shape: f32[32,16], index: 21, kind: input, shape index: {}]
  %s22 = inlined_call_operand.hbm [shape: f32[2,16], index: 22, kind: output, shape index: {}]
  %s23 = sld [smem:[#allocation0]]
  $region98: #{encode_image.1} parent=0
    _
  %s25 = ssub.s32 1, %s23
  %s26 = scalar_select 0, %s25, %s23
  $region1: #{encode_image.1} parent=0
    #allocation3 [shape = 'u8[1024]{0}', space=vmem, size = 0x400, scoped, tag = 'output window, operand 0, single buffered']
    #allocation4 [shape = 's32[1]{0}', space=sflag, size = 0x4, scoped, tag = 'scoped memory for encode_image.1']
    %27 = vsyncpa [#allocation4], 0
    // Predicated region
    $region2: #{encode_image.1} parent=1 // pred_check
      _
    $region3: #{encode_image.1} parent=1 // pred_check_branch
      %29 = sbr.rel (0) target = $region5
    $region4: #{encode_image.1} parent=1 // pred_region
      _
    $region5: #{encode_image.1} parent=1 // pred_fallthru
      _
    // Predicated region
    $region6: #{encode_image.1} parent=1 // pred_check
      _
    $region7: #{encode_image.1} parent=1 // pred_check_branch
      %31 = sbr.rel (0) target = $region9
    $region8: #{encode_image.1} parent=1 // pred_region
      _
    $region9: #{encode_image.1} parent=1 // pred_fallthru
      _
    // Predicated region
    $region10: #{encode_image.1} parent=1 // pred_check
      _
    $region11: #{encode_image.1} parent=1 // pred_check_branch
      %33 = sbr.rel (0) target = $region13
    $region12: #{encode_image.1} parent=1 // pred_region
      _
    $region13: #{encode_image.1} parent=1 // pred_fallthru
      _
    // Predicated region
    $region14: #{encode_image.1} parent=1 // pred_check
      _
    $region15: #{encode_image.1} parent=1 // pred_check_branch
      %35 = sbr.rel (0) target = $region17
    $region16: #{encode_image.1} parent=1 // pred_region
      _
    $region17: #{encode_image.1} parent=1 // pred_fallthru
      _
    // Predicated region
    $region18: #{encode_image.1} parent=1 // pred_check
      _
    $region19: #{encode_image.1} parent=1 // pred_check_branch
      %37 = sbr.rel (0) target = $region21
    $region20: #{encode_image.1} parent=1 // pred_region
      _
    $region21: #{encode_image.1} parent=1 // pred_fallthru
      _
    // Predicated region
    $region22: #{encode_image.1} parent=1 // pred_check
      _
    $region23: #{encode_image.1} parent=1 // pred_check_branch
      %39 = sbr.rel (0) target = $region25
    $region24: #{encode_image.1} parent=1 // pred_region
      _
    $region25: #{encode_image.1} parent=1 // pred_fallthru
      _
    // Predicated region
    $region26: #{encode_image.1} parent=1 // pred_check
      _
    $region27: #{encode_image.1} parent=1 // pred_check_branch
      %41 = sbr.rel (0) target = $region29
    $region28: #{encode_image.1} parent=1 // pred_region
      _
    $region29: #{encode_image.1} parent=1 // pred_fallthru
      _
    // Predicated region
    $region30: #{encode_image.1} parent=1 // pred_check
      _
    $region31: #{encode_image.1} parent=1 // pred_check_branch
      %43 = sbr.rel (0) target = $region33
    $region32: #{encode_image.1} parent=1 // pred_region
      _
    $region33: #{encode_image.1} parent=1 // pred_fallthru
      _
    // Predicated region
    $region34: #{encode_image.1} parent=1 // pred_check
      _
    $region35: #{encode_image.1} parent=1 // pred_check_branch
      %45 = sbr.rel (0) target = $region37
    $region36: #{encode_image.1} parent=1 // pred_region
      _
    $region37: #{encode_image.1} parent=1 // pred_fallthru
      _
    // Predicated region
    $region38: #{encode_image.1} parent=1 // pred_check
      _
    $region39: #{encode_image.1} parent=1 // pred_check_branch
      %47 = sbr.rel (0) target = $region41
    $region40: #{encode_image.1} parent=1 // pred_region
      _
    $region41: #{encode_image.1} parent=1 // pred_fallthru
      _
    // Predicated region
    $region42: #{encode_image.1} parent=1 // pred_check
      _
    $region43: #{encode_image.1} parent=1 // pred_check_branch
      %49 = sbr.rel (0) target = $region45
    $region44: #{encode_image.1} parent=1 // pred_region
      _
    $region45: #{encode_image.1} parent=1 // pred_fallthru
      _
    // Predicated region
    $region46: #{encode_image.1} parent=1 // pred_check
      _
    $region47: #{encode_image.1} parent=1 // pred_check_branch
      %51 = sbr.rel (0) target = $region49
    $region48: #{encode_image.1} parent=1 // pred_region
      _
    $region49: #{encode_image.1} parent=1 // pred_fallthru
      _
    // Predicated region
    $region50: #{encode_image.1} parent=1 // pred_check
      _
    $region51: #{encode_image.1} parent=1 // pred_check_branch
      %53 = sbr.rel (0) target = $region53
    $region52: #{encode_image.1} parent=1 // pred_region
      _
    $region53: #{encode_image.1} parent=1 // pred_fallthru
      _
    // Predicated region
    $region54: #{encode_image.1} parent=1 // pred_check
      _
    $region55: #{encode_image.1} parent=1 // pred_check_branch
      %55 = sbr.rel (0) target = $region57
    $region56: #{encode_image.1} parent=1 // pred_region
      _
    $region57: #{encode_image.1} parent=1 // pred_fallthru
      _
    // Predicated region
    $region58: #{encode_image.1} parent=1 // pred_check
      _
    $region59: #{encode_image.1} parent=1 // pred_check_branch
      %57 = sbr.rel (0) target = $region61
    $region60: #{encode_image.1} parent=1 // pred_region
      _
    $region61: #{encode_image.1} parent=1 // pred_fallthru
      _
    // Predicated region
    $region62: #{encode_image.1} parent=1 // pred_check
      _
    $region63: #{encode_image.1} parent=1 // pred_check_branch
      %59 = sbr.rel (0) target = $region65
    $region64: #{encode_image.1} parent=1 // pred_region
      _
    $region65: #{encode_image.1} parent=1 // pred_fallthru
      _
    // Predicated region
    $region66: #{encode_image.1} parent=1 // pred_check
      _
    $region67: #{encode_image.1} parent=1 // pred_check_branch
      %61 = sbr.rel (0) target = $region69
    $region68: #{encode_image.1} parent=1 // pred_region
      _
    $region69: #{encode_image.1} parent=1 // pred_fallthru
      _
    // Predicated region
    $region70: #{encode_image.1} parent=1 // pred_check
      _
    $region71: #{encode_image.1} parent=1 // pred_check_branch
      %63 = sbr.rel (0) target = $region73
    $region72: #{encode_image.1} parent=1 // pred_region
      _
    $region73: #{encode_image.1} parent=1 // pred_fallthru
      _
    // Predicated region
    $region74: #{encode_image.1} parent=1 // pred_check
      _
    $region75: #{encode_image.1} parent=1 // pred_check_branch
      %65 = sbr.rel (0) target = $region77
    $region76: #{encode_image.1} parent=1 // pred_region
      _
    $region77: #{encode_image.1} parent=1 // pred_fallthru
      _
    // Predicated region
    $region78: #{encode_image.1} parent=1 // pred_check
      _
    $region79: #{encode_image.1} parent=1 // pred_check_branch
      %67 = sbr.rel (0) target = $region81
    $region80: #{encode_image.1} parent=1 // pred_region
      _
    $region81: #{encode_image.1} parent=1 // pred_fallthru
      _
    // Predicated region
    $region82: #{encode_image.1} parent=1 // pred_check
      _
    $region83: #{encode_image.1} parent=1 // pred_check_branch
      %69 = sbr.rel (0) target = $region85
    $region84: #{encode_image.1} parent=1 // pred_region
      _
    $region85: #{encode_image.1} parent=1 // pred_fallthru
      _
    // Predicated region
    $region86: #{encode_image.1} parent=1 // pred_check
      _
    $region87: #{encode_image.1} parent=1 // pred_check_branch
      %71 = sbr.rel (0) target = $region89
    $region88: #{encode_image.1} parent=1 // pred_region
      _
    $region89: #{encode_image.1} parent=1 // pred_fallthru
      _
    %v72 = vld [vmem:[%s0] sm:$0xff]
    %v73 = vld [vmem:[%s0 + $0x8] sm:$0xff]
    %v74 = vld [vmem:[%s1] sm:$0xff]
    %v75 = vld [vmem:[%s1 + $0x8] sm:$0xff]
    %v76 = vld [vmem:[%s1 + $0x10] sm:$0xff]
    %v77 = vld [vmem:[%s1 + $0x18] sm:$0xff]
    %v78 = vld [vmem:[%s1 + $0x20] sm:$0xff]
    %v79 = vld [vmem:[%s1 + $0x28] sm:$0xff]
    %v80 = vld [vmem:[%s1 + $0x30] sm:$0xff]
    %v81 = vld [vmem:[%s1 + $0x38] sm:$0xff]
    %v82 = vld [vmem:[%s1 + $0x40] sm:$0xff]
    %v83 = vld [vmem:[%s1 + $0x48] sm:$0xff]
    %v84 = vld [vmem:[%s1 + $0x50] sm:$0xff]
    %v85 = vld [vmem:[%s1 + $0x58] sm:$0xff]
    %v86 = vld [vmem:[%s1 + $0x60] sm:$0xff]
    %v87 = vld [vmem:[%s1 + $0x68] sm:$0xff]
    %v88 = vld [vmem:[%s1 + $0x70] sm:$0xff]
    %v89 = vld [vmem:[%s1 + $0x78] sm:$0xff]
    %v90 = vld [vmem:[%s1 + $0x80] sm:$0xff]
    %v91 = vld [vmem:[%s1 + $0x88] sm:$0xff]
    %v92 = vld [vmem:[%s1 + $0x90] sm:$0xff]
    %v93 = vld [vmem:[%s1 + $0x98] sm:$0xff]
    %v94 = vld [vmem:[%s1 + $0xa0] sm:$0xff]
    %v95 = vld [vmem:[%s1 + $0xa8] sm:$0xff]
    %v96 = vld [vmem:[%s1 + $0xb0] sm:$0xff]
    %v97 = vld [vmem:[%s1 + $0xb8] sm:$0xff]
    %vm98 = vcmask 523264
    %v100 = vsel %vm98, %v73, 0
    %102 = vmatpush.msra.mxu0 %v89
    %103 = vmatpush.msra.mxu0 %v88
    %104 = vmatpush.msra.mxu0 %v87
    %105 = vmatpush.msra.mxu0 %v86
    %106 = vmatpush.msra.mxu0 %v85
    %107 = vmatpush.msra.mxu0 %v84
    %108 = vmatpush.msra.mxu0 %v83
    %109 = vmatpush.msra.mxu0 %v82
    %110 = vmatpush.msra.mxu0 %v81
    %111 = vmatpush.msra.mxu0 %v80
    %112 = vmatpush.msra.mxu0 %v79
    %113 = vmatpush.msra.mxu0 %v78
    %114 = vmatpush.msra.mxu0 %v77
    %115 = vmatpush.msra.mxu0 %v76
    %116 = vmatpush.msra.mxu0 %v75
    %117 = vmatpush.msra.mxu0 %v74
    %118 = vmatmul.f32.gmra.mxu0 %v72
    %v119 = vpop.f32.mrf.mxu0
    %v120 = vadd.f32 0.0, %v119
    %121 = vdwg.mxu0
    %122 = vmatpush.msra.mxu0 0.0
    %123 = vmatpush.msra.mxu0 0.0
    %124 = vmatpush.msra.mxu0 0.0
    %125 = vmatpush.msra.mxu0 0.0
    %126 = vmatpush.msra.mxu0 0.0
    %127 = vmatpush.msra.mxu0 0.0
    %128 = vmatpush.msra.mxu0 0.0
    %129 = vmatpush.msra.mxu0 0.0
    %130 = vmatpush.msra.mxu0 %v97
    %131 = vmatpush.msra.mxu0 %v96
    %132 = vmatpush.msra.mxu0 %v95
    %133 = vmatpush.msra.mxu0 %v94
    %134 = vmatpush.msra.mxu0 %v93
    %135 = vmatpush.msra.mxu0 %v92
    %136 = vmatpush.msra.mxu0 %v91
    %137 = vmatpush.msra.mxu0 %v90
    %138 = vmatmul.f32.gmra.mxu0 %v100
    %v139 = vpop.f32.mrf.mxu0
    %v140 = vadd.f32 %v120, %v139
    %141 = vdwg.mxu0
    %v142 = vld [vmem:[%s2] sm:$0x1]
    %v143 = vld [vmem:[%s3] sm:$0x1]
    %v144 = vadd.f32 %v142, %v143
    %vm145 = vcmask 253952
    %146 = vst.msk [vmem:[#allocation2] sm:$0x1] %vm145, %v144
    %v147 = vld [vmem:[%s3 + $0x1] sm:$0xf]
    %v148 = vadd.f32 %v140, %v147
    %vm149 = vcmask 257024
    %150 = vst.msk [vmem:[#allocation2 + $0x1] sm:$0xf] %vm149, %v148
    %v151 = vld [vmem:[%s2] sm:$0x1]
    %v152 = vld [vmem:[%s3] sm:$0x1]
    %v153 = vadd.f32 %v151, %v152
    %154 = vst.msk [vmem:[#allocation2 + $0x5] sm:$0x1] %vm145, %v153
    %v155 = vld [vmem:[%s3 + $0x1] sm:$0xf]
    %v157 = vrot.slane %v155, 4
    %v159 = vadd.f32 %v140, %v157
    %vm160 = vcmask 261124
    %161 = vst.msk [vmem:[#allocation2 + $0x2] sm:$0xf0] %vm160, %v159
    %v162 = vld [vmem:[#allocation2] sm:$0xff]
    %v163 = vld [vmem:[#allocation2 + $0x8] sm:$0x3]
    %v164 = vld [vmem:[%s5] sm:$0x1]
    %v165 = vld [vmem:[%s6] sm:$0x1]
    %vm166 = vcmask 261120
    %v167 = vsel %vm166, %v162, 0.0
    %168 = vadd.xlane.f32.xlu0 %v167
    %v169 = vpop.xlane.xlu0 %168
    %vm170 = vcmask 254976
    %v171 = vsel %vm170, %v163, 0.0
    %172 = vadd.xlane.f32.xlu0 %v171
    %v173 = vpop.xlane.xlu0 %172
    %v174 = vrcp.pop 32.0
    %v175 = vmul.f32 32.0, %v174
    %v176 = vsub.f32 1.0, %v175
    %v177 = vmul.f32 %v174, %v176
    %v178 = vadd.f32 %v174, %v177
    %vm179 = vweird.f32 %v174
    %v180 = vsel %vm179, %v174, %v178
    %v181 = vmul.f32 %v169, %v180
    %v182 = vmul.f32 %v173, %v180
    %v183 = vsub.f32 %v162, %v181
    %v184 = vsub.f32 %v163, %v182
    %v185 = vmul.f32 %v183, %v183
    %v186 = vmul.f32 %v184, %v184
    %v187 = vsel %vm166, %v185, 0.0
    %188 = vadd.xlane.f32.xlu0 %v187
    %v189 = vpop.xlane.xlu0 %188
    %v190 = vsel %vm170, %v186, 0.0
    %191 = vadd.xlane.f32.xlu0 %v190
    %v192 = vpop.xlane.xlu0 %191
    %v193 = vmul.f32 %v189, %v180
    %v194 = vmul.f32 %v192, %v180
    %v195 = vadd.f32 %v193, 1e-05
    %v196 = vadd.f32 %v194, 1e-05
    %v197 = vrsqrt.pop %v195
    %v198 = vmul.f32 %v197, %v195
    %v199 = vmul.f32 %v198, %v197
    %v200 = vmul.f32 0.5, %v199
    %v201 = vsub.f32 1.5, %v200
    %v202 = vmul.f32 %v197, %v201
    %vm203 = vweird.f32 %v195
    %vm204 = vweird.f32 %v197
    %vm205 = vmor %vm203, %vm204
    %v206 = vsel %vm205, %v197, %v202
    %v207 = vrsqrt.pop %v196
    %v208 = vmul.f32 %v207, %v196
    %v209 = vmul.f32 %v208, %v207
    %v210 = vmul.f32 0.5, %v209
    %v211 = vsub.f32 1.5, %v210
    %v212 = vmul.f32 %v207, %v211
    %vm213 = vweird.f32 %v196
    %vm214 = vweird.f32 %v207
    %vm215 = vmor %vm213, %vm214
    %v216 = vsel %vm215, %v207, %v212
    %v217 = vmul.f32 %v183, %v206
    %v218 = vmul.f32 %v184, %v216
    %v220 = vperm.slane %v164, 0
    %v222 = vmul.f32 %v217, %v220
    %v223 = vmul.f32 %v218, %v220
    %v225 = vperm.slane %v165, 0
    %v227 = vadd.f32 %v222, %v225
    %v228 = vadd.f32 %v223, %v225
    %v229 = vld [vmem:[%s4] sm:$0xff]
    %v230 = vld [vmem:[%s4 + $0x8] sm:$0x3]
    %v231 = vld [vmem:[%s7] sm:$0x1]
    %v232 = vld [vmem:[%s8] sm:$0x1]
    %v233 = vsel %vm166, %v227, 0.0
    %234 = vadd.xlane.f32.xlu0 %v233
    %v235 = vpop.xlane.xlu0 %234
    %v236 = vsel %vm170, %v228, 0.0
    %237 = vadd.xlane.f32.xlu0 %v236
    %v238 = vpop.xlane.xlu0 %237
    %v239 = vmul.f32 %v235, %v180
    %v240 = vmul.f32 %v238, %v180
    %v241 = vsub.f32 %v227, %v239
    %v242 = vsub.f32 %v228, %v240
    %v243 = vmul.f32 %v241, %v241
    %v244 = vmul.f32 %v242, %v242
    %v245 = vsel %vm166, %v243, 0.0
    %246 = vadd.xlane.f32.xlu0 %v245
    %v247 = vpop.xlane.xlu0 %246
    %v248 = vsel %vm170, %v244, 0.0
    %249 = vadd.xlane.f32.xlu0 %v248
    %v250 = vpop.xlane.xlu0 %249
    %v251 = vmul.f32 %v247, %v180
    %v252 = vmul.f32 %v250, %v180
    %v253 = vadd.f32 %v251, 1e-05
    %v254 = vadd.f32 %v252, 1e-05
    %v255 = vrsqrt.pop %v253
    %v256 = vmul.f32 %v255, %v253
    %v257 = vmul.f32 %v256, %v255
    %v258 = vmul.f32 0.5, %v257
    %v259 = vsub.f32 1.5, %v258
    %v260 = vmul.f32 %v255, %v259
    %vm261 = vweird.f32 %v253
    %vm262 = vweird.f32 %v255
    %vm263 = vmor %vm261, %vm262
    %v264 = vsel %vm263, %v255, %v260
    %v265 = vrsqrt.pop %v254
    %v266 = vmul.f32 %v265, %v254
    %v267 = vmul.f32 %v266, %v265
    %v268 = vmul.f32 0.5, %v267
    %v269 = vsub.f32 1.5, %v268
    %v270 = vmul.f32 %v265, %v269
    %vm271 = vweird.f32 %v254
    %vm272 = vweird.f32 %v265
    %vm273 = vmor %vm271, %vm272
    %v274 = vsel %vm273, %v265, %v270
    %v275 = vmul.f32 %v241, %v264
    %v276 = vmul.f32 %v242, %v274
    %v278 = vperm.slane %v231, 0
    %v280 = vmul.f32 %v275, %v278
    %v281 = vmul.f32 %v276, %v278
    %v283 = vperm.slane %v232, 0
    %v285 = vadd.f32 %v280, %v283
    %v286 = vadd.f32 %v281, %v283
    %v287 = vld [vmem:[%s9] sm:$0xff]
    %v288 = vld [vmem:[%s9 + $0x8] sm:$0xff]
    %v289 = vld [vmem:[%s9 + $0x10] sm:$0xff]
    %v290 = vld [vmem:[%s9 + $0x18] sm:$0xff]
    %v291 = vld [vmem:[%s10] sm:$0x1]
    %v293 = vperm.slane %v291, 0
    %v296 = vsel %vm166, %v285, 0
    %v299 = vsel %vm166, %v286, 0
    %301 = vmatpush.msra.mxu0 0.0
    %302 = vmatpush.msra.mxu0 0.0
    %303 = vmatpush.msra.mxu0 0.0
    %304 = vmatpush.msra.mxu0 0.0
    %305 = vmatpush.msra.mxu0 0.0
    %306 = vmatpush.msra.mxu0 0.0
    %307 = vmatpush.msra.mxu0 0.0
    %308 = vmatpush.msra.mxu0 0.0
    %309 = vmatpush.msra.mxu0 0.0
    %310 = vmatpush.msra.mxu0 0.0
    %311 = vmatpush.msra.mxu0 0.0
    %312 = vmatpush.msra.mxu0 0.0
    %313 = vmatpush.msra.mxu0 %v290
    %314 = vmatpush.msra.mxu0 %v289
    %315 = vmatpush.msra.mxu0 %v288
    %316 = vmatpush.msra.mxu0 %v287
    %317 = vmatmul.f32.gmra.mxu0 %v296
    %v318 = vpop.f32.mrf.mxu0
    %v319 = vadd.f32 %v293, %v318
    %320 = vmatmul.f32.gmra.mxu0 %v299
    %v321 = vpop.f32.mrf.mxu0
    %v322 = vadd.f32 %v293, %v321
    %323 = vdwg.mxu0
    %v324 = vld [vmem:[%s11] sm:$0xff]
    %v325 = vld [vmem:[%s11 + $0x8] sm:$0xff]
    %v326 = vld [vmem:[%s11 + $0x10] sm:$0xff]
    %v327 = vld [vmem:[%s11 + $0x18] sm:$0xff]
    %330 = vrot.lane.b32.xlu0 %v319, 96
    %v331 = vpop.permute.xlu0 %330
    %332 = vrot.lane.b32.xlu0 %v322, 96
    %v333 = vpop.permute.xlu0 %332
    %vm334 = vcmask 130048
    %v335 = vsel %vm334, %v319, 0
    %v337 = vsel %vm334, %v322, 0
    %v339 = vsel %vm334, %v331, 0
    %v341 = vsel %vm334, %v333, 0
    %343 = vmatpush.xpose.msra.mxu0 0.0
    %344 = vmatpush.xpose.msra.mxu0 0.0
    %345 = vmatpush.xpose.msra.mxu0 0.0
    %346 = vmatpush.xpose.msra.mxu0 0.0
    %347 = vmatpush.xpose.msra.mxu0 0.0
    %348 = vmatpush.xpose.msra.mxu0 0.0
    %349 = vmatpush.xpose.msra.mxu0 0.0
    %350 = vmatpush.xpose.msra.mxu0 0.0
    %351 = vmatpush.xpose.msra.mxu0 0.0
    %352 = vmatpush.xpose.msra.mxu0 0.0
    %353 = vmatpush.xpose.msra.mxu0 0.0
    %354 = vmatpush.xpose.msra.mxu0 0.0
    %355 = vmatpush.xpose.msra.mxu0 0.0
    %356 = vmatpush.xpose.msra.mxu0 0.0
    %357 = vmatpush.xpose.msra.mxu0 %v341
    %358 = vmatpush.xpose.msra.mxu0 %v339
    %359 = vmatmul.f32.gmra.mxu0 %v335
    %v360 = vpop.f32.mrf.mxu0
    %v361 = vadd.f32 %v229, %v360
    %362 = vmatmul.f32.gmra.mxu0 %v337
    %v363 = vpop.f32.mrf.mxu0
    %v364 = vadd.f32 %v230, %v363
    %365 = vdwg.mxu0
    %vm366 = vcmask 80896
    %v367 = vsel %vm366, %v361, -inf
    %368 = vmax.xlane.f32.xlu0 %v367
    %v369 = vpop.xlane.xlu0 %368
    %vm370 = vcmask 74752
    %v371 = vsel %vm370, %v364, -inf
    %372 = vmax.xlane.f32.xlu0 %v371
    %v373 = vpop.xlane.xlu0 %372
    %v374 = vsub.f32 %v361, %v369
    %v375 = vsub.f32 %v364, %v373
    %v376 = vmul.f32 %v374, 1.442695
    %v377 = vpow.pop %v376
    %v378 = vmul.f32 %v375, 1.442695
    %v379 = vpow.pop %v378
    %v380 = vsel %vm366, %v377, 0.0
    %381 = vadd.xlane.f32.xlu0 %v380
    %v382 = vpop.xlane.xlu0 %381
    %v383 = vsel %vm370, %v379, 0.0
    %384 = vadd.xlane.f32.xlu0 %v383
    %v385 = vpop.xlane.xlu0 %384
    %v386 = vrcp.pop %v382
    %v387 = vrcp.pop %v385
    %v388 = vmul.f32 %v377, %v386
    %v389 = vmul.f32 %v379, %v387
    %390 = vrot.lane.b32.xlu0 %v319, 64
    %v391 = vpop.permute.xlu0 %390
    %392 = vrot.lane.b32.xlu0 %v322, 64
    %v393 = vpop.permute.xlu0 %392
    %v396 = vsel %vm366, %v388, 0
    %v399 = vsel %vm366, %v389, 0
    %vm401 = vcmask 1041408
    %v402 = vsel %vm401, %v393, 0
    %404 = vmatpush.msra.mxu0 0.0
    %405 = vmatpush.msra.mxu0 0.0
    %406 = vmatpush.msra.mxu0 0.0
    %407 = vmatpush.msra.mxu0 0.0
    %408 = vmatpush.msra.mxu0 0.0
    %409 = vmatpush.msra.mxu0 0.0
    %410 = vmatpush.msra.mxu0 0.0
    %411 = vmatpush.msra.mxu0 0.0
    %412 = vmatpush.msra.mxu0 0.0
    %413 = vmatpush.msra.mxu0 0.0
    %414 = vmatpush.msra.mxu0 0.0
    %415 = vmatpush.msra.mxu0 0.0
    %416 = vmatpush.msra.mxu0 0.0
    %417 = vmatpush.msra.mxu0 0.0
    %418 = vmatpush.msra.mxu0 %v402
    %419 = vmatpush.msra.mxu0 %v391
    %420 = vmatmul.f32.gmra.mxu0 %v396
    %v421 = vpop.f32.mrf.mxu0
    %v422 = vadd.f32 0.0, %v421
    %423 = vmatmul.f32.gmra.mxu0 %v399
    %v424 = vpop.f32.mrf.mxu0
    %v425 = vadd.f32 0.0, %v424
    %426 = vdwg.mxu0
    %427 = vrot.lane.b32.xlu0 %v319, 112
    %v428 = vpop.permute.xlu0 %427
    %429 = vrot.lane.b32.xlu0 %v322, 112
    %v430 = vpop.permute.xlu0 %429
    %431 = vrot.lane.b32.xlu0 %v319, 80
    %v432 = vpop.permute.xlu0 %431
    %433 = vrot.lane.b32.xlu0 %v322, 80
    %v434 = vpop.permute.xlu0 %433
    %v435 = vsel %vm334, %v428, 0
    %v437 = vsel %vm334, %v430, 0
    %v439 = vsel %vm334, %v432, 0
    %v441 = vsel %vm334, %v434, 0
    %443 = vmatpush.xpose.msra.mxu0 0.0
    %444 = vmatpush.xpose.msra.mxu0 0.0
    %445 = vmatpush.xpose.msra.mxu0 0.0
    %446 = vmatpush.xpose.msra.mxu0 0.0
    %447 = vmatpush.xpose.msra.mxu0 0.0
    %448 = vmatpush.xpose.msra.mxu0 0.0
    %449 = vmatpush.xpose.msra.mxu0 0.0
    %450 = vmatpush.xpose.msra.mxu0 0.0
    %451 = vmatpush.xpose.msra.mxu0 0.0
    %452 = vmatpush.xpose.msra.mxu0 0.0
    %453 = vmatpush.xpose.msra.mxu0 0.0
    %454 = vmatpush.xpose.msra.mxu0 0.0
    %455 = vmatpush.xpose.msra.mxu0 0.0
    %456 = vmatpush.xpose.msra.mxu0 0.0
    %457 = vmatpush.xpose.msra.mxu0 %v441
    %458 = vmatpush.xpose.msra.mxu0 %v439
    %459 = vmatmul.f32.gmra.mxu0 %v435
    %v460 = vpop.f32.mrf.mxu0
    %v461 = vadd.f32 %v229, %v460
    %462 = vmatmul.f32.gmra.mxu0 %v437
    %v463 = vpop.f32.mrf.mxu0
    %v464 = vadd.f32 %v230, %v463
    %465 = vdwg.mxu0
    %v466 = vsel %vm366, %v461, -inf
    %467 = vmax.xlane.f32.xlu0 %v466
    %v468 = vpop.xlane.xlu0 %467
    %v469 = vsel %vm370, %v464, -inf
    %470 = vmax.xlane.f32.xlu0 %v469
    %v471 = vpop.xlane.xlu0 %470
    %v472 = vsub.f32 %v461, %v468
    %v473 = vsub.f32 %v464, %v471
    %v474 = vmul.f32 %v472, 1.442695
    %v475 = vpow.pop %v474
    %v476 = vmul.f32 %v473, 1.442695
    %v477 = vpow.pop %v476
    %v478 = vsel %vm366, %v475, 0.0
    %479 = vadd.xlane.f32.xlu0 %v478
    %v480 = vpop.xlane.xlu0 %479
    %v481 = vsel %vm370, %v477, 0.0
    %482 = vadd.xlane.f32.xlu0 %v481
    %v483 = vpop.xlane.xlu0 %482
    %v484 = vrcp.pop %v480
    %v485 = vrcp.pop %v483
    %v486 = vmul.f32 %v475, %v484
    %v487 = vmul.f32 %v477, %v485
    %488 = vrot.lane.b32.xlu0 %v319, 48
    %v489 = vpop.permute.xlu0 %488
    %490 = vrot.lane.b32.xlu0 %v322, 48
    %v491 = vpop.permute.xlu0 %490
    %v494 = vsel %vm366, %v486, 0
    %v497 = vsel %vm366, %v487, 0
    %v499 = vsel %vm401, %v491, 0
    %501 = vmatpush.msra.mxu0 0.0
    %502 = vmatpush.msra.mxu0 0.0
    %503 = vmatpush.msra.mxu0 0.0
    %504 = vmatpush.msra.mxu0 0.0
    %505 = vmatpush.msra.mxu0 0.0
    %506 = vmatpush.msra.mxu0 0.0
    %507 = vmatpush.msra.mxu0 0.0
    %508 = vmatpush.msra.mxu0 0.0
    %509 = vmatpush.msra.mxu0 0.0
    %510 = vmatpush.msra.mxu0 0.0
    %511 = vmatpush.msra.mxu0 0.0
    %512 = vmatpush.msra.mxu0 0.0
    %513 = vmatpush.msra.mxu0 0.0
    %514 = vmatpush.msra.mxu0 0.0
    %515 = vmatpush.msra.mxu0 %v499
    %516 = vmatpush.msra.mxu0 %v489
    %517 = vmatmul.f32.gmra.mxu0 %v494
    %v518 = vpop.f32.mrf.mxu0
    %v519 = vadd.f32 0.0, %v518
    %520 = vmatmul.f32.gmra.mxu0 %v497
    %v521 = vpop.f32.mrf.mxu0
    %v522 = vadd.f32 0.0, %v521
    %523 = vdwg.mxu0
    %v525 = vsel %vm334, %v519, 0
    %v528 = vsel %vm334, %v522, 0
    %530 = vmatpush.msra.mxu0 0.0
    %531 = vmatpush.msra.mxu0 0.0
    %532 = vmatpush.msra.mxu0 0.0
    %533 = vmatpush.msra.mxu0 0.0
    %534 = vmatpush.msra.mxu0 0.0
    %535 = vmatpush.msra.mxu0 0.0
    %536 = vmatpush.msra.mxu0 0.0
    %537 = vmatpush.msra.mxu0 0.0
    %538 = vmatpush.msra.mxu0 0.0
    %539 = vmatpush.msra.mxu0 0.0
    %540 = vmatpush.msra.mxu0 0.0
    %541 = vmatpush.msra.mxu0 0.0
    %542 = vmatpush.msra.mxu0 0.0
    %543 = vmatpush.msra.mxu0 0.0
    %544 = vmatpush.msra.mxu0 %v327
    %545 = vmatpush.msra.mxu0 %v326
    %546 = vmatmul.f32.gmra.mxu0 %v525
    %v547 = vpop.f32.mrf.mxu0
    %v548 = vadd.f32 0.0, %v547
    %549 = vmatmul.f32.gmra.mxu0 %v528
    %v550 = vpop.f32.mrf.mxu0
    %v551 = vadd.f32 0.0, %v550
    %552 = vdwg.mxu0
    %v554 = vsel %vm334, %v422, 0
    %v557 = vsel %vm334, %v425, 0
    %559 = vmatpush.msra.mxu0 0.0
    %560 = vmatpush.msra.mxu0 0.0
    %561 = vmatpush.msra.mxu0 0.0
    %562 = vmatpush.msra.mxu0 0.0
    %563 = vmatpush.msra.mxu0 0.0
    %564 = vmatpush.msra.mxu0 0.0
    %565 = vmatpush.msra.mxu0 0.0
    %566 = vmatpush.msra.mxu0 0.0
    %567 = vmatpush.msra.mxu0 0.0
    %568 = vmatpush.msra.mxu0 0.0
    %569 = vmatpush.msra.mxu0 0.0
    %570 = vmatpush.msra.mxu0 0.0
    %571 = vmatpush.msra.mxu0 0.0
    %572 = vmatpush.msra.mxu0 0.0
    %573 = vmatpush.msra.mxu0 %v325
    %574 = vmatpush.msra.mxu0 %v324
    %575 = vmatmul.f32.gmra.mxu0 %v554
    %v576 = vpop.f32.mrf.mxu0
    %v577 = vadd.f32 %v548, %v576
    %578 = vmatmul.f32.gmra.mxu0 %v557
    %v579 = vpop.f32.mrf.mxu0
    %v580 = vadd.f32 %v551, %v579
    %581 = vdwg.mxu0
    %v582 = vadd.f32 %v227, %v577
    %v583 = vadd.f32 %v228, %v580
    %v584 = vld [vmem:[%s12] sm:$0x1]
    %v586 = vperm.slane %v584, 0
    %v588 = vadd.f32 %v582, %v586
    %v589 = vadd.f32 %v583, %v586
    %v590 = vld [vmem:[%s13] sm:$0x1]
    %v591 = vld [vmem:[%s14] sm:$0x1]
    %v592 = vsel %vm166, %v588, 0.0
    %593 = vadd.xlane.f32.xlu0 %v592
    %v594 = vpop.xlane.xlu0 %593
    %v595 = vsel %vm170, %v589, 0.0
    %596 = vadd.xlane.f32.xlu0 %v595
    %v597 = vpop.xlane.xlu0 %596
    %v598 = vmul.f32 %v594, %v180
    %v599 = vmul.f32 %v597, %v180
    %v600 = vsub.f32 %v588, %v598
    %v601 = vsub.f32 %v589, %v599
    %v602 = vmul.f32 %v600, %v600
    %v603 = vmul.f32 %v601, %v601
    %v604 = vsel %vm166, %v602, 0.0
    %605 = vadd.xlane.f32.xlu0 %v604
    %v606 = vpop.xlane.xlu0 %605
    %v607 = vsel %vm170, %v603, 0.0
    %608 = vadd.xlane.f32.xlu0 %v607
    %v609 = vpop.xlane.xlu0 %608
    %v610 = vmul.f32 %v606, %v180
    %v611 = vmul.f32 %v609, %v180
    %v612 = vadd.f32 %v610, 1e-05
    %v613 = vadd.f32 %v611, 1e-05
    %v614 = vrsqrt.pop %v612
    %v615 = vmul.f32 %v614, %v612
    %v616 = vmul.f32 %v615, %v614
    %v617 = vmul.f32 0.5, %v616
    %v618 = vsub.f32 1.5, %v617
    %v619 = vmul.f32 %v614, %v618
    %vm620 = vweird.f32 %v612
    %vm621 = vweird.f32 %v614
    %vm622 = vmor %vm620, %vm621
    %v623 = vsel %vm622, %v614, %v619
    %v624 = vrsqrt.pop %v613
    %v625 = vmul.f32 %v624, %v613
    %v626 = vmul.f32 %v625, %v624
    %v627 = vmul.f32 0.5, %v626
    %v628 = vsub.f32 1.5, %v627
    %v629 = vmul.f32 %v624, %v628
    %vm630 = vweird.f32 %v613
    %vm631 = vweird.f32 %v624
    %vm632 = vmor %vm630, %vm631
    %v633 = vsel %vm632, %v624, %v629
    %v634 = vmul.f32 %v600, %v623
    %v635 = vmul.f32 %v601, %v633
    %v637 = vperm.slane %v590, 0
    %v639 = vmul.f32 %v634, %v637
    %v640 = vmul.f32 %v635, %v637
    %v642 = vperm.slane %v591, 0
    %v644 = vadd.f32 %v639, %v642
    %v645 = vadd.f32 %v640, %v642
    %v646 = vld [vmem:[%s15] sm:$0xff]
    %v647 = vld [vmem:[%s15 + $0x8] sm:$0xff]
    %v648 = vld [vmem:[%s15 + $0x10] sm:$0xff]
    %v649 = vld [vmem:[%s15 + $0x18] sm:$0xff]
    %v650 = vld [vmem:[%s16] sm:$0x1]
    %v652 = vperm.slane %v650, 0
    %v655 = vsel %vm166, %v644, 0
    %v658 = vsel %vm166, %v645, 0
    %660 = vmatpush.msra.mxu0 0.0
    %661 = vmatpush.msra.mxu0 0.0
    %662 = vmatpush.msra.mxu0 0.0
    %663 = vmatpush.msra.mxu0 0.0
    %664 = vmatpush.msra.mxu0 0.0
    %665 = vmatpush.msra.mxu0 0.0
    %666 = vmatpush.msra.mxu0 0.0
    %667 = vmatpush.msra.mxu0 0.0
    %668 = vmatpush.msra.mxu0 0.0
    %669 = vmatpush.msra.mxu0 0.0
    %670 = vmatpush.msra.mxu0 0.0
    %671 = vmatpush.msra.mxu0 0.0
    %672 = vmatpush.msra.mxu0 %v649
    %673 = vmatpush.msra.mxu0 %v648
    %674 = vmatpush.msra.mxu0 %v647
    %675 = vmatpush.msra.mxu0 %v646
    %676 = vmatmul.f32.gmra.mxu0 %v655
    %v677 = vpop.f32.mrf.mxu0
    %v678 = vadd.f32 %v652, %v677
    %679 = vmatmul.f32.gmra.mxu0 %v658
    %v680 = vpop.f32.mrf.mxu0
    %v681 = vadd.f32 %v652, %v680
    %682 = vdwg.mxu0
    %v683 = vmul.f32 %v678, 1.702
    %v684 = vmul.f32 %v681, 1.702
    %v685 = vxor.u32 %v683, 2147483648
    %v686 = vxor.u32 %v684, 2147483648
    %v687 = vmul.f32 %v685, 1.442695
    %v688 = vpow.pop %v687
    %v689 = vmul.f32 %v686, 1.442695
    %v690 = vpow.pop %v689
    %v691 = vadd.f32 %v688, 1.0
    %v692 = vadd.f32 %v690, 1.0
    %v693 = vrcp.pop %v691
    %v694 = vmul.f32 %v691, %v693
    %v695 = vsub.f32 1.0, %v694
    %v696 = vmul.f32 %v693, %v695
    %v697 = vadd.f32 %v693, %v696
    %vm698 = vweird.f32 %v691
    %vm699 = vweird.f32 %v693
    %vm700 = vmor %vm698, %vm699
    %v701 = vsel %vm700, %v693, %v697
    %v702 = vand.u32 2147483647, %v691
    %vm703 = vcmp.eq.f32.partialorder %v702, 8.507059e+37
    %v704 = vand.u32 %v691, 2147483648
    %v705 = vor.u32 1.1754944e-38, %v704
    %v706 = vsel %vm703, %v705, %v701
    %v707 = vmul.f32 1.0, %v706
    %v708 = vrcp.pop %v692
    %v709 = vmul.f32 %v692, %v708
    %v710 = vsub.f32 1.0, %v709
    %v711 = vmul.f32 %v708, %v710
    %v712 = vadd.f32 %v708, %v711
    %vm713 = vweird.f32 %v692
    %vm714 = vweird.f32 %v708
    %vm715 = vmor %vm713, %vm714
    %v716 = vsel %vm715, %v708, %v712
    %v717 = vand.u32 2147483647, %v692
    %vm718 = vcmp.eq.f32.partialorder %v717, 8.507059e+37
    %v719 = vand.u32 %v692, 2147483648
    %v720 = vor.u32 1.1754944e-38, %v719
    %v721 = vsel %vm718, %v720, %v716
    %v722 = vmul.f32 1.0, %v721
    %v723 = vmul.f32 %v678, %v707
    %v724 = vmul.f32 %v681, %v722
    %v725 = vld [vmem:[%s17] sm:$0xff]
    %v726 = vld [vmem:[%s17 + $0x8] sm:$0xff]
    %v727 = vld [vmem:[%s17 + $0x10] sm:$0xff]
    %v728 = vld [vmem:[%s17 + $0x18] sm:$0xff]
    %v729 = vld [vmem:[%s17 + $0x20] sm:$0xff]
    %v730 = vld [vmem:[%s17 + $0x28] sm:$0xff]
    %v731 = vld [vmem:[%s17 + $0x30] sm:$0xff]
    %v732 = vld [vmem:[%s17 + $0x38] sm:$0xff]
    %v733 = vld [vmem:[%s17 + $0x40] sm:$0xff]
    %v734 = vld [vmem:[%s17 + $0x48] sm:$0xff]
    %v735 = vld [vmem:[%s17 + $0x50] sm:$0xff]
    %v736 = vld [vmem:[%s17 + $0x58] sm:$0xff]
    %v737 = vld [vmem:[%s17 + $0x60] sm:$0xff]
    %v738 = vld [vmem:[%s17 + $0x68] sm:$0xff]
    %v739 = vld [vmem:[%s17 + $0x70] sm:$0xff]
    %v740 = vld [vmem:[%s17 + $0x78] sm:$0xff]
    %741 = vmatpush.msra.mxu0 %v740
    %742 = vmatpush.msra.mxu0 %v739
    %743 = vmatpush.msra.mxu0 %v738
    %744 = vmatpush.msra.mxu0 %v737
    %745 = vmatpush.msra.mxu0 %v736
    %746 = vmatpush.msra.mxu0 %v735
    %747 = vmatpush.msra.mxu0 %v734
    %748 = vmatpush.msra.mxu0 %v733
    %749 = vmatpush.msra.mxu0 %v732
    %750 = vmatpush.msra.mxu0 %v731
    %751 = vmatpush.msra.mxu0 %v730
    %752 = vmatpush.msra.mxu0 %v729
    %753 = vmatpush.msra.mxu0 %v728
    %754 = vmatpush.msra.mxu0 %v727
    %755 = vmatpush.msra.mxu0 %v726
    %756 = vmatpush.msra.mxu0 %v725
    %757 = vmatmul.f32.gmra.mxu0 %v723
    %v758 = vpop.f32.mrf.mxu0
    %v759 = vadd.f32 0.0, %v758
    %760 = vmatmul.f32.gmra.mxu0 %v724
    %v761 = vpop.f32.mrf.mxu0
    %v762 = vadd.f32 0.0, %v761
    %763 = vdwg.mxu0
    %v764 = vadd.f32 %v588, %v759
    %v765 = vadd.f32 %v589, %v762
    %v766 = vld [vmem:[%s18] sm:$0x1]
    %v768 = vperm.slane %v766, 0
    %v770 = vadd.f32 %v764, %v768
    %v771 = vadd.f32 %v765, %v768
    %s772 = scalar_lea.vmem %s7, 1
    %v773 = vld [vmem:[%s772] sm:$0x1]
    %s774 = scalar_lea.vmem %s8, 1
    %v775 = vld [vmem:[%s774] sm:$0x1]
    %v776 = vsel %vm166, %v770, 0.0
    %777 = vadd.xlane.f32.xlu0 %v776
    %v778 = vpop.xlane.xlu0 %777
    %v779 = vsel %vm170, %v771, 0.0
    %780 = vadd.xlane.f32.xlu0 %v779
    %v781 = vpop.xlane.xlu0 %780
    %v782 = vmul.f32 %v778, %v180
    %v783 = vmul.f32 %v781, %v180
    %v784 = vsub.f32 %v770, %v782
    %v785 = vsub.f32 %v771, %v783
    %v786 = vmul.f32 %v784, %v784
    %v787 = vmul.f32 %v785, %v785
    %v788 = vsel %vm166, %v786, 0.0
    %789 = vadd.xlane.f32.xlu0 %v788
    %v790 = vpop.xlane.xlu0 %789
    %v791 = vsel %vm170, %v787, 0.0
    %792 = vadd.xlane.f32.xlu0 %v791
    %v793 = vpop.xlane.xlu0 %792
    %v794 = vmul.f32 %v790, %v180
    %v795 = vmul.f32 %v793, %v180
    %v796 = vadd.f32 %v794, 1e-05
    %v797 = vadd.f32 %v795, 1e-05
    %v798 = vrsqrt.pop %v796
    %v799 = vmul.f32 %v798, %v796
    %v800 = vmul.f32 %v799, %v798
    %v801 = vmul.f32 0.5, %v800
    %v802 = vsub.f32 1.5, %v801
    %v803 = vmul.f32 %v798, %v802
    %vm804 = vweird.f32 %v796
    %vm805 = vweird.f32 %v798
    %vm806 = vmor %vm804, %vm805
    %v807 = vsel %vm806, %v798, %v803
    %v808 = vrsqrt.pop %v797
    %v809 = vmul.f32 %v808, %v797
    %v810 = vmul.f32 %v809, %v808
    %v811 = vmul.f32 0.5, %v810
    %v812 = vsub.f32 1.5, %v811
    %v813 = vmul.f32 %v808, %v812
    %vm814 = vweird.f32 %v797
    %vm815 = vweird.f32 %v808
    %vm816 = vmor %vm814, %vm815
    %v817 = vsel %vm816, %v808, %v813
    %v818 = vmul.f32 %v784, %v807
    %v819 = vmul.f32 %v785, %v817
    %v821 = vperm.slane %v773, 0
    %v823 = vmul.f32 %v818, %v821
    %v824 = vmul.f32 %v819, %v821
    %v826 = vperm.slane %v775, 0
    %v828 = vadd.f32 %v823, %v826
    %v829 = vadd.f32 %v824, %v826
    %s830 = scalar_lea.vmem %s9, 32
    %v831 = vld [vmem:[%s830] sm:$0xff]
    %v832 = vld [vmem:[%s830 + $0x8] sm:$0xff]
    %v833 = vld [vmem:[%s830 + $0x10] sm:$0xff]
    %v834 = vld [vmem:[%s830 + $0x18] sm:$0xff]
    %s835 = scalar_lea.vmem %s10, 1
    %v836 = vld [vmem:[%s835] sm:$0x1]
    %v838 = vperm.slane %v836, 0
    %v841 = vsel %vm166, %v828, 0
    %v844 = vsel %vm166, %v829, 0
    %846 = vmatpush.msra.mxu0 0.0
    %847 = vmatpush.msra.mxu0 0.0
    %848 = vmatpush.msra.mxu0 0.0
    %849 = vmatpush.msra.mxu0 0.0
    %850 = vmatpush.msra.mxu0 0.0
    %851 = vmatpush.msra.mxu0 0.0
    %852 = vmatpush.msra.mxu0 0.0
    %853 = vmatpush.msra.mxu0 0.0
    %854 = vmatpush.msra.mxu0 0.0
    %855 = vmatpush.msra.mxu0 0.0
    %856 = vmatpush.msra.mxu0 0.0
    %857 = vmatpush.msra.mxu0 0.0
    %858 = vmatpush.msra.mxu0 %v834
    %859 = vmatpush.msra.mxu0 %v833
    %860 = vmatpush.msra.mxu0 %v832
    %861 = vmatpush.msra.mxu0 %v831
    %862 = vmatmul.f32.gmra.mxu0 %v841
    %v863 = vpop.f32.mrf.mxu0
    %v864 = vadd.f32 %v838, %v863
    %865 = vmatmul.f32.gmra.mxu0 %v844
    %v866 = vpop.f32.mrf.mxu0
    %v867 = vadd.f32 %v838, %v866
    %868 = vdwg.mxu0
    %s869 = scalar_lea.vmem %s11, 32
    %v870 = vld [vmem:[%s869] sm:$0xff]
    %v871 = vld [vmem:[%s869 + $0x8] sm:$0xff]
    %v872 = vld [vmem:[%s869 + $0x10] sm:$0xff]
    %v873 = vld [vmem:[%s869 + $0x18] sm:$0xff]
    %876 = vrot.lane.b32.xlu0 %v864, 96
    %v877 = vpop.permute.xlu0 %876
    %878 = vrot.lane.b32.xlu0 %v867, 96
    %v879 = vpop.permute.xlu0 %878
    %v880 = vsel %vm334, %v864, 0
    %v882 = vsel %vm334, %v867, 0
    %v884 = vsel %vm334, %v877, 0
    %v886 = vsel %vm334, %v879, 0
    %888 = vmatpush.xpose.msra.mxu0 0.0
    %889 = vmatpush.xpose.msra.mxu0 0.0
    %890 = vmatpush.xpose.msra.mxu0 0.0
    %891 = vmatpush.xpose.msra.mxu0 0.0
    %892 = vmatpush.xpose.msra.mxu0 0.0
    %893 = vmatpush.xpose.msra.mxu0 0.0
    %894 = vmatpush.xpose.msra.mxu0 0.0
    %895 = vmatpush.xpose.msra.mxu0 0.0
    %896 = vmatpush.xpose.msra.mxu0 0.0
    %897 = vmatpush.xpose.msra.mxu0 0.0
    %898 = vmatpush.xpose.msra.mxu0 0.0
    %899 = vmatpush.xpose.msra.mxu0 0.0
    %900 = vmatpush.xpose.msra.mxu0 0.0
    %901 = vmatpush.xpose.msra.mxu0 0.0
    %902 = vmatpush.xpose.msra.mxu0 %v886
    %903 = vmatpush.xpose.msra.mxu0 %v884
    %904 = vmatmul.f32.gmra.mxu0 %v880
    %v905 = vpop.f32.mrf.mxu0
    %v906 = vadd.f32 %v229, %v905
    %907 = vmatmul.f32.gmra.mxu0 %v882
    %v908 = vpop.f32.mrf.mxu0
    %v909 = vadd.f32 %v230, %v908
    %910 = vdwg.mxu0
    %v911 = vsel %vm366, %v906, -inf
    %912 = vmax.xlane.f32.xlu0 %v911
    %v913 = vpop.xlane.xlu0 %912
    %v914 = vsel %vm370, %v909, -inf
    %915 = vmax.xlane.f32.xlu0 %v914
    %v916 = vpop.xlane.xlu0 %915
    %v917 = vsub.f32 %v906, %v913
    %v918 = vsub.f32 %v909, %v916
    %v919 = vmul.f32 %v917, 1.442695
    %v920 = vpow.pop %v919
    %v921 = vmul.f32 %v918, 1.442695
    %v922 = vpow.pop %v921
    %v923 = vsel %vm366, %v920, 0.0
    %924 = vadd.xlane.f32.xlu0 %v923
    %v925 = vpop.xlane.xlu0 %924
    %v926 = vsel %vm370, %v922, 0.0
    %927 = vadd.xlane.f32.xlu0 %v926
    %v928 = vpop.xlane.xlu0 %927
    %v929 = vrcp.pop %v925
    %v930 = vrcp.pop %v928
    %v931 = vmul.f32 %v920, %v929
    %v932 = vmul.f32 %v922, %v930
    %933 = vrot.lane.b32.xlu0 %v864, 64
    %v934 = vpop.permute.xlu0 %933
    %935 = vrot.lane.b32.xlu0 %v867, 64
    %v936 = vpop.permute.xlu0 %935
    %v939 = vsel %vm366, %v931, 0
    %v942 = vsel %vm366, %v932, 0
    %v944 = vsel %vm401, %v936, 0
    %946 = vmatpush.msra.mxu0 0.0
    %947 = vmatpush.msra.mxu0 0.0
    %948 = vmatpush.msra.mxu0 0.0
    %949 = vmatpush.msra.mxu0 0.0
    %950 = vmatpush.msra.mxu0 0.0
    %951 = vmatpush.msra.mxu0 0.0
    %952 = vmatpush.msra.mxu0 0.0
    %953 = vmatpush.msra.mxu0 0.0
    %954 = vmatpush.msra.mxu0 0.0
    %955 = vmatpush.msra.mxu0 0.0
    %956 = vmatpush.msra.mxu0 0.0
    %957 = vmatpush.msra.mxu0 0.0
    %958 = vmatpush.msra.mxu0 0.0
    %959 = vmatpush.msra.mxu0 0.0
    %960 = vmatpush.msra.mxu0 %v944
    %961 = vmatpush.msra.mxu0 %v934
    %962 = vmatmul.f32.gmra.mxu0 %v939
    %v963 = vpop.f32.mrf.mxu0
    %v964 = vadd.f32 0.0, %v963
    %965 = vmatmul.f32.gmra.mxu0 %v942
    %v966 = vpop.f32.mrf.mxu0
    %v967 = vadd.f32 0.0, %v966
    %968 = vdwg.mxu0
    %969 = vrot.lane.b32.xlu0 %v864, 112
    %v970 = vpop.permute.xlu0 %969
    %971 = vrot.lane.b32.xlu0 %v867, 112
    %v972 = vpop.permute.xlu0 %971
    %973 = vrot.lane.b32.xlu0 %v864, 80
    %v974 = vpop.permute.xlu0 %973
    %975 = vrot.lane.b32.xlu0 %v867, 80
    %v976 = vpop.permute.xlu0 %975
    %v977 = vsel %vm334, %v970, 0
    %v979 = vsel %vm334, %v972, 0
    %v981 = vsel %vm334, %v974, 0
    %v983 = vsel %vm334, %v976, 0
    %985 = vmatpush.xpose.msra.mxu0 0.0
    %986 = vmatpush.xpose.msra.mxu0 0.0
    %987 = vmatpush.xpose.msra.mxu0 0.0
    %988 = vmatpush.xpose.msra.mxu0 0.0
    %989 = vmatpush.xpose.msra.mxu0 0.0
    %990 = vmatpush.xpose.msra.mxu0 0.0
    %991 = vmatpush.xpose.msra.mxu0 0.0
    %992 = vmatpush.xpose.msra.mxu0 0.0
    %993 = vmatpush.xpose.msra.mxu0 0.0
    %994 = vmatpush.xpose.msra.mxu0 0.0
    %995 = vmatpush.xpose.msra.mxu0 0.0
    %996 = vmatpush.xpose.msra.mxu0 0.0
    %997 = vmatpush.xpose.msra.mxu0 0.0
    %998 = vmatpush.xpose.msra.mxu0 0.0
    %999 = vmatpush.xpose.msra.mxu0 %v983
    %1000 = vmatpush.xpose.msra.mxu0 %v981
    %1001 = vmatmul.f32.gmra.mxu0 %v977
    %v1002 = vpop.f32.mrf.mxu0
    %v1003 = vadd.f32 %v229, %v1002
    %1004 = vmatmul.f32.gmra.mxu0 %v979
    %v1005 = vpop.f32.mrf.mxu0
    %v1006 = vadd.f32 %v230, %v1005
    %1007 = vdwg.mxu0
    %v1008 = vsel %vm366, %v1003, -inf
    %1009 = vmax.xlane.f32.xlu0 %v1008
    %v1010 = vpop.xlane.xlu0 %1009
    %v1011 = vsel %vm370, %v1006, -inf
    %1012 = vmax.xlane.f32.xlu0 %v1011
    %v1013 = vpop.xlane.xlu0 %1012
    %v1014 = vsub.f32 %v1003, %v1010
    %v1015 = vsub.f32 %v1006, %v1013
    %v1016 = vmul.f32 %v1014, 1.442695
    %v1017 = vpow.pop %v1016
    %v1018 = vmul.f32 %v1015, 1.442695
    %v1019 = vpow.pop %v1018
    %v1020 = vsel %vm366, %v1017, 0.0
    %1021 = vadd.xlane.f32.xlu0 %v1020
    %v1022 = vpop.xlane.xlu0 %1021
    %v1023 = vsel %vm370, %v1019, 0.0
    %1024 = vadd.xlane.f32.xlu0 %v1023
    %v1025 = vpop.xlane.xlu0 %1024
    %v1026 = vrcp.pop %v1022
    %v1027 = vrcp.pop %v1025
    %v1028 = vmul.f32 %v1017, %v1026
    %v1029 = vmul.f32 %v1019, %v1027
    %1030 = vrot.lane.b32.xlu0 %v864, 48
    %v1031 = vpop.permute.xlu0 %1030
    %1032 = vrot.lane.b32.xlu0 %v867, 48
    %v1033 = vpop.permute.xlu0 %1032
    %v1036 = vsel %vm366, %v1028, 0
    %v1039 = vsel %vm366, %v1029, 0
    %v1041 = vsel %vm401, %v1033, 0
    %1043 = vmatpush.msra.mxu0 0.0
    %1044 = vmatpush.msra.mxu0 0.0
    %1045 = vmatpush.msra.mxu0 0.0
    %1046 = vmatpush.msra.mxu0 0.0
    %1047 = vmatpush.msra.mxu0 0.0
    %1048 = vmatpush.msra.mxu0 0.0
    %1049 = vmatpush.msra.mxu0 0.0
    %1050 = vmatpush.msra.mxu0 0.0
    %1051 = vmatpush.msra.mxu0 0.0
    %1052 = vmatpush.msra.mxu0 0.0
    %1053 = vmatpush.msra.mxu0 0.0
    %1054 = vmatpush.msra.mxu0 0.0
    %1055 = vmatpush.msra.mxu0 0.0
    %1056 = vmatpush.msra.mxu0 0.0
    %1057 = vmatpush.msra.mxu0 %v1041
    %1058 = vmatpush.msra.mxu0 %v1031
    %1059 = vmatmul.f32.gmra.mxu0 %v1036
    %v1060 = vpop.f32.mrf.mxu0
    %v1061 = vadd.f32 0.0, %v1060
    %1062 = vmatmul.f32.gmra.mxu0 %v1039
    %v1063 = vpop.f32.mrf.mxu0
    %v1064 = vadd.f32 0.0, %v1063
    %1065 = vdwg.mxu0
    %v1067 = vsel %vm334, %v1061, 0
    %v1070 = vsel %vm334, %v1064, 0
    %1072 = vmatpush.msra.mxu0 0.0
    %1073 = vmatpush.msra.mxu0 0.0
    %1074 = vmatpush.msra.mxu0 0.0
    %1075 = vmatpush.msra.mxu0 0.0
    %1076 = vmatpush.msra.mxu0 0.0
    %1077 = vmatpush.msra.mxu0 0.0
    %1078 = vmatpush.msra.mxu0 0.0
    %1079 = vmatpush.msra.mxu0 0.0
    %1080 = vmatpush.msra.mxu0 0.0
    %1081 = vmatpush.msra.mxu0 0.0
    %1082 = vmatpush.msra.mxu0 0.0
    %1083 = vmatpush.msra.mxu0 0.0
    %1084 = vmatpush.msra.mxu0 0.0
    %1085 = vmatpush.msra.mxu0 0.0
    %1086 = vmatpush.msra.mxu0 %v873
    %1087 = vmatpush.msra.mxu0 %v872
    %1088 = vmatmul.f32.gmra.mxu0 %v1067
    %v1089 = vpop.f32.mrf.mxu0
    %v1090 = vadd.f32 0.0, %v1089
    %1091 = vmatmul.f32.gmra.mxu0 %v1070
    %v1092 = vpop.f32.mrf.mxu0
    %v1093 = vadd.f32 0.0, %v1092
    %1094 = vdwg.mxu0
    %v1096 = vsel %vm334, %v964, 0
    %v1099 = vsel %vm334, %v967, 0
    %1101 = vmatpush.msra.mxu0 0.0
    %1102 = vmatpush.msra.mxu0 0.0
    %1103 = vmatpush.msra.mxu0 0.0
    %1104 = vmatpush.msra.mxu0 0.0
    %1105 = vmatpush.msra.mxu0 0.0
    %1106 = vmatpush.msra.mxu0 0.0
    %1107 = vmatpush.msra.mxu0 0.0
    %1108 = vmatpush.msra.mxu0 0.0
    %1109 = vmatpush.msra.mxu0 0.0
    %1110 = vmatpush.msra.mxu0 0.0
    %1111 = vmatpush.msra.mxu0 0.0
    %1112 = vmatpush.msra.mxu0 0.0
    %1113 = vmatpush.msra.mxu0 0.0
    %1114 = vmatpush.msra.mxu0 0.0
    %1115 = vmatpush.msra.mxu0 %v871
    %1116 = vmatpush.msra.mxu0 %v870
    %1117 = vmatmul.f32.gmra.mxu0 %v1096
    %v1118 = vpop.f32.mrf.mxu0
    %v1119 = vadd.f32 %v1090, %v1118
    %1120 = vmatmul.f32.gmra.mxu0 %v1099
    %v1121 = vpop.f32.mrf.mxu0
    %v1122 = vadd.f32 %v1093, %v1121
    %1123 = vdwg.mxu0
    %v1124 = vadd.f32 %v770, %v1119
    %v1125 = vadd.f32 %v771, %v1122
    %s1126 = scalar_lea.vmem %s12, 1
    %v1127 = vld [vmem:[%s1126] sm:$0x1]
    %v1129 = vperm.slane %v1127, 0
    %v1131 = vadd.f32 %v1124, %v1129
    %v1132 = vadd.f32 %v1125, %v1129
    %s1133 = scalar_lea.vmem %s13, 1
    %v1134 = vld [vmem:[%s1133] sm:$0x1]
    %s1135 = scalar_lea.vmem %s14, 1
    %v1136 = vld [vmem:[%s1135] sm:$0x1]
    %v1137 = vsel %vm166, %v1131, 0.0
    %1138 = vadd.xlane.f32.xlu0 %v1137
    %v1139 = vpop.xlane.xlu0 %1138
    %v1140 = vsel %vm170, %v1132, 0.0
    %1141 = vadd.xlane.f32.xlu0 %v1140
    %v1142 = vpop.xlane.xlu0 %1141
    %v1143 = vmul.f32 %v1139, %v180
    %v1144 = vmul.f32 %v1142, %v180
    %v1145 = vsub.f32 %v1131, %v1143
    %v1146 = vsub.f32 %v1132, %v1144
    %v1147 = vmul.f32 %v1145, %v1145
    %v1148 = vmul.f32 %v1146, %v1146
    %v1149 = vsel %vm166, %v1147, 0.0
    %1150 = vadd.xlane.f32.xlu0 %v1149
    %v1151 = vpop.xlane.xlu0 %1150
    %v1152 = vsel %vm170, %v1148, 0.0
    %1153 = vadd.xlane.f32.xlu0 %v1152
    %v1154 = vpop.xlane.xlu0 %1153
    %v1155 = vmul.f32 %v1151, %v180
    %v1156 = vmul.f32 %v1154, %v180
    %v1157 = vadd.f32 %v1155, 1e-05
    %v1158 = vadd.f32 %v1156, 1e-05
    %v1159 = vrsqrt.pop %v1157
    %v1160 = vmul.f32 %v1159, %v1157
    %v1161 = vmul.f32 %v1160, %v1159
    %v1162 = vmul.f32 0.5, %v1161
    %v1163 = vsub.f32 1.5, %v1162
    %v1164 = vmul.f32 %v1159, %v1163
    %vm1165 = vweird.f32 %v1157
    %vm1166 = vweird.f32 %v1159
    %vm1167 = vmor %vm1165, %vm1166
    %v1168 = vsel %vm1167, %v1159, %v1164
    %v1169 = vrsqrt.pop %v1158
    %v1170 = vmul.f32 %v1169, %v1158
    %v1171 = vmul.f32 %v1170, %v1169
    %v1172 = vmul.f32 0.5, %v1171
    %v1173 = vsub.f32 1.5, %v1172
    %v1174 = vmul.f32 %v1169, %v1173
    %vm1175 = vweird.f32 %v1158
    %vm1176 = vweird.f32 %v1169
    %vm1177 = vmor %vm1175, %vm1176
    %v1178 = vsel %vm1177, %v1169, %v1174
    %v1179 = vmul.f32 %v1145, %v1168
    %v1180 = vmul.f32 %v1146, %v1178
    %v1182 = vperm.slane %v1134, 0
    %v1184 = vmul.f32 %v1179, %v1182
    %v1185 = vmul.f32 %v1180, %v1182
    %v1187 = vperm.slane %v1136, 0
    %v1189 = vadd.f32 %v1184, %v1187
    %v1190 = vadd.f32 %v1185, %v1187
    %s1191 = scalar_lea.vmem %s15, 32
    %v1192 = vld [vmem:[%s1191] sm:$0xff]
    %v1193 = vld [vmem:[%s1191 + $0x8] sm:$0xff]
    %v1194 = vld [vmem:[%s1191 + $0x10] sm:$0xff]
    %v1195 = vld [vmem:[%s1191 + $0x18] sm:$0xff]
    %s1196 = scalar_lea.vmem %s16, 1
    %v1197 = vld [vmem:[%s1196] sm:$0x1]
    %v1199 = vperm.slane %v1197, 0
    %v1202 = vsel %vm166, %v1189, 0
    %v1205 = vsel %vm166, %v1190, 0
    %1207 = vmatpush.msra.mxu0 0.0
    %1208 = vmatpush.msra.mxu0 0.0
    %1209 = vmatpush.msra.mxu0 0.0
    %1210 = vmatpush.msra.mxu0 0.0
    %1211 = vmatpush.msra.mxu0 0.0
    %1212 = vmatpush.msra.mxu0 0.0
    %1213 = vmatpush.msra.mxu0 0.0
    %1214 = vmatpush.msra.mxu0 0.0
    %1215 = vmatpush.msra.mxu0 0.0
    %1216 = vmatpush.msra.mxu0 0.0
    %1217 = vmatpush.msra.mxu0 0.0
    %1218 = vmatpush.msra.mxu0 0.0
    %1219 = vmatpush.msra.mxu0 %v1195
    %1220 = vmatpush.msra.mxu0 %v1194
    %1221 = vmatpush.msra.mxu0 %v1193
    %1222 = vmatpush.msra.mxu0 %v1192
    %1223 = vmatmul.f32.gmra.mxu0 %v1202
    %v1224 = vpop.f32.mrf.mxu0
    %v1225 = vadd.f32 %v1199, %v1224
    %1226 = vmatmul.f32.gmra.mxu0 %v1205
    %v1227 = vpop.f32.mrf.mxu0
    %v1228 = vadd.f32 %v1199, %v1227
    %1229 = vdwg.mxu0
    %v1230 = vmul.f32 %v1225, 1.702
    %v1231 = vmul.f32 %v1228, 1.702
    %v1232 = vxor.u32 %v1230, 2147483648
    %v1233 = vxor.u32 %v1231, 2147483648
    %v1234 = vmul.f32 %v1232, 1.442695
    %v1235 = vpow.pop %v1234
    %v1236 = vmul.f32 %v1233, 1.442695
    %v1237 = vpow.pop %v1236
    %v1238 = vadd.f32 %v1235, 1.0
    %v1239 = vadd.f32 %v1237, 1.0
    %v1240 = vrcp.pop %v1238
    %v1241 = vmul.f32 %v1238, %v1240
    %v1242 = vsub.f32 1.0, %v1241
    %v1243 = vmul.f32 %v1240, %v1242
    %v1244 = vadd.f32 %v1240, %v1243
    %vm1245 = vweird.f32 %v1238
    %vm1246 = vweird.f32 %v1240
    %vm1247 = vmor %vm1245, %vm1246
    %v1248 = vsel %vm1247, %v1240, %v1244
    %v1249 = vand.u32 2147483647, %v1238
    %vm1250 = vcmp.eq.f32.partialorder %v1249, 8.507059e+37
    %v1251 = vand.u32 %v1238, 2147483648
    %v1252 = vor.u32 1.1754944e-38, %v1251
    %v1253 = vsel %vm1250, %v1252, %v1248
    %v1254 = vmul.f32 1.0, %v1253
    %v1255 = vrcp.pop %v1239
    %v1256 = vmul.f32 %v1239, %v1255
    %v1257 = vsub.f32 1.0, %v1256
    %v1258 = vmul.f32 %v1255, %v1257
    %v1259 = vadd.f32 %v1255, %v1258
    %vm1260 = vweird.f32 %v1239
    %vm1261 = vweird.f32 %v1255
    %vm1262 = vmor %vm1260, %vm1261
    %v1263 = vsel %vm1262, %v1255, %v1259
    %v1264 = vand.u32 2147483647, %v1239
    %vm1265 = vcmp.eq.f32.partialorder %v1264, 8.507059e+37
    %v1266 = vand.u32 %v1239, 2147483648
    %v1267 = vor.u32 1.1754944e-38, %v1266
    %v1268 = vsel %vm1265, %v1267, %v1263
    %v1269 = vmul.f32 1.0, %v1268
    %v1270 = vmul.f32 %v1225, %v1254
    %v1271 = vmul.f32 %v1228, %v1269
    %s1272 = scalar_lea.vmem %s17, 128
    %v1273 = vld [vmem:[%s1272] sm:$0xff]
    %v1274 = vld [vmem:[%s1272 + $0x8] sm:$0xff]
    %v1275 = vld [vmem:[%s1272 + $0x10] sm:$0xff]
    %v1276 = vld [vmem:[%s1272 + $0x18] sm:$0xff]
    %v1277 = vld [vmem:[%s1272 + $0x20] sm:$0xff]
    %v1278 = vld [vmem:[%s1272 + $0x28] sm:$0xff]
    %v1279 = vld [vmem:[%s1272 + $0x30] sm:$0xff]
    %v1280 = vld [vmem:[%s1272 + $0x38] sm:$0xff]
    %v1281 = vld [vmem:[%s1272 + $0x40] sm:$0xff]
    %v1282 = vld [vmem:[%s1272 + $0x48] sm:$0xff]
    %v1283 = vld [vmem:[%s1272 + $0x50] sm:$0xff]
    %v1284 = vld [vmem:[%s1272 + $0x58] sm:$0xff]
    %v1285 = vld [vmem:[%s1272 + $0x60] sm:$0xff]
    %v1286 = vld [vmem:[%s1272 + $0x68] sm:$0xff]
    %v1287 = vld [vmem:[%s1272 + $0x70] sm:$0xff]
    %v1288 = vld [vmem:[%s1272 + $0x78] sm:$0xff]
    %1289 = vmatpush.msra.mxu0 %v1288
    %1290 = vmatpush.msra.mxu0 %v1287
    %1291 = vmatpush.msra.mxu0 %v1286
    %1292 = vmatpush.msra.mxu0 %v1285
    %1293 = vmatpush.msra.mxu0 %v1284
    %1294 = vmatpush.msra.mxu0 %v1283
    %1295 = vmatpush.msra.mxu0 %v1282
    %1296 = vmatpush.msra.mxu0 %v1281
    %1297 = vmatpush.msra.mxu0 %v1280
    %1298 = vmatpush.msra.mxu0 %v1279
    %1299 = vmatpush.msra.mxu0 %v1278
    %1300 = vmatpush.msra.mxu0 %v1277
    %1301 = vmatpush.msra.mxu0 %v1276
    %1302 = vmatpush.msra.mxu0 %v1275
    %1303 = vmatpush.msra.mxu0 %v1274
    %1304 = vmatpush.msra.mxu0 %v1273
    %1305 = vmatmul.f32.gmra.mxu0 %v1270
    %v1306 = vpop.f32.mrf.mxu0
    %v1307 = vadd.f32 0.0, %v1306
    %1308 = vmatmul.f32.gmra.mxu0 %v1271
    %v1309 = vpop.f32.mrf.mxu0
    %v1310 = vadd.f32 0.0, %v1309
    %1311 = vdwg.mxu0
    %v1312 = vadd.f32 %v1131, %v1307
    %v1313 = vadd.f32 %v1132, %v1310
    %s1314 = scalar_lea.vmem %s18, 1
    %v1315 = vld [vmem:[%s1314] sm:$0x1]
    %v1317 = vperm.slane %v1315, 0
    %v1319 = vadd.f32 %v1312, %v1317
    %v1320 = vadd.f32 %v1313, %v1317
    %v1321 = vld [vmem:[%s19] sm:$0x1]
    %v1322 = vld [vmem:[%s20] sm:$0x1]
    %v1323 = vsel %vm166, %v1319, 0.0
    %1324 = vadd.xlane.f32.xlu0 %v1323
    %v1325 = vpop.xlane.xlu0 %1324
    %v1326 = vsel %vm170, %v1320, 0.0
    %1327 = vadd.xlane.f32.xlu0 %v1326
    %v1328 = vpop.xlane.xlu0 %1327
    %v1329 = vmul.f32 %v1325, %v180
    %v1330 = vmul.f32 %v1328, %v180
    %v1331 = vsub.f32 %v1319, %v1329
    %v1332 = vsub.f32 %v1320, %v1330
    %v1333 = vmul.f32 %v1331, %v1331
    %v1334 = vmul.f32 %v1332, %v1332
    %v1335 = vsel %vm166, %v1333, 0.0
    %1336 = vadd.xlane.f32.xlu0 %v1335
    %v1337 = vpop.xlane.xlu0 %1336
    %v1338 = vsel %vm170, %v1334, 0.0
    %1339 = vadd.xlane.f32.xlu0 %v1338
    %v1340 = vpop.xlane.xlu0 %1339
    %v1341 = vmul.f32 %v1337, %v180
    %v1342 = vmul.f32 %v1340, %v180
    %v1343 = vadd.f32 %v1341, 1e-05
    %v1344 = vadd.f32 %v1342, 1e-05
    %v1345 = vrsqrt.pop %v1343
    %v1346 = vmul.f32 %v1345, %v1343
    %v1347 = vmul.f32 %v1346, %v1345
    %v1348 = vmul.f32 0.5, %v1347
    %v1349 = vsub.f32 1.5, %v1348
    %v1350 = vmul.f32 %v1345, %v1349
    %vm1351 = vweird.f32 %v1343
    %vm1352 = vweird.f32 %v1345
    %vm1353 = vmor %vm1351, %vm1352
    %v1354 = vsel %vm1353, %v1345, %v1350
    %v1355 = vrsqrt.pop %v1344
    %v1356 = vmul.f32 %v1355, %v1344
    %v1357 = vmul.f32 %v1356, %v1355
    %v1358 = vmul.f32 0.5, %v1357
    %v1359 = vsub.f32 1.5, %v1358
    %v1360 = vmul.f32 %v1355, %v1359
    %vm1361 = vweird.f32 %v1344
    %vm1362 = vweird.f32 %v1355
    %vm1363 = vmor %vm1361, %vm1362
    %v1364 = vsel %vm1363, %v1355, %v1360
    %v1365 = vmul.f32 %v1331, %v1354
    %v1366 = vmul.f32 %v1332, %v1364
    %v1368 = vperm.slane %v1321, 0
    %v1370 = vmul.f32 %v1365, %v1368
    %v1371 = vmul.f32 %v1366, %v1368
    %v1373 = vperm.slane %v1322, 0
    %v1375 = vadd.f32 %v1370, %v1373
    %v1376 = vadd.f32 %v1371, %v1373
    %v1377 = vld [vmem:[%s21] sm:$0xff]
    %v1378 = vld [vmem:[%s21 + $0x8] sm:$0xff]
    %v1379 = vld [vmem:[%s21 + $0x10] sm:$0xff]
    %v1380 = vld [vmem:[%s21 + $0x18] sm:$0xff]
    %v1382 = vsel %vm166, %v1375, 0
    %v1385 = vsel %vm166, %v1376, 0
    %1387 = vmatpush.msra.mxu0 0.0
    %1388 = vmatpush.msra.mxu0 0.0
    %1389 = vmatpush.msra.mxu0 0.0
    %1390 = vmatpush.msra.mxu0 0.0
    %1391 = vmatpush.msra.mxu0 0.0
    %1392 = vmatpush.msra.mxu0 0.0
    %1393 = vmatpush.msra.mxu0 0.0
    %1394 = vmatpush.msra.mxu0 0.0
    %1395 = vmatpush.msra.mxu0 0.0
    %1396 = vmatpush.msra.mxu0 0.0
    %1397 = vmatpush.msra.mxu0 0.0
    %1398 = vmatpush.msra.mxu0 0.0
    %1399 = vmatpush.msra.mxu0 %v1380
    %1400 = vmatpush.msra.mxu0 %v1379
    %1401 = vmatpush.msra.mxu0 %v1378
    %1402 = vmatpush.msra.mxu0 %v1377
    %1403 = vmatmul.f32.gmra.mxu0 %v1382
    %v1404 = vpop.f32.mrf.mxu0
    %v1405 = vadd.f32 0.0, %v1404
    %1406 = vmatmul.f32.gmra.mxu0 %v1385
    %v1407 = vpop.f32.mrf.mxu0
    %1408 = vdwg.mxu0
    %vm1409 = vcmask 122880
    %1410 = vst.msk [vmem:[#allocation3] sm:$0x1] %vm1409, %v1405
    %vm1411 = vcmask 128005
    %1412 = vst.msk [vmem:[#allocation3 - $0x4] sm:$0x20] %vm1411, %v1405
    // Predicated region
    $region90: #{encode_image.1} parent=1 // pred_check
      _
    $region91: #{encode_image.1} parent=1 // pred_check_branch
      %1414 = sbr.rel (0) target = $region93
    $region92: #{encode_image.1} parent=1 // pred_region
      %1416 = vsyncadd [#allocation4], 0
      %s1418 = sshll.u32 [#allocation3], 4
      %s1419 = int_to_ptr.vmem [resolvable:$true] %s1418
      %s1420 = sshll.u32 %s22, 4
      %s1421 = int_to_ptr.hbm [resolvable:$true] %s1420
      %1423 = dma.vmem_to_hbm [thread:$0]  %s1419, 32, %s1421, [#allocation4]
    $region93: #{encode_image.1} parent=1 // pred_fallthru
      _
    // Predicated region
    $region94: #{encode_image.1} parent=1 // pred_check
      _
    $region95: #{encode_image.1} parent=1 // pred_check_branch
      %1425 = sbr.rel (0) target = $region97
    $region96: #{encode_image.1} parent=1 // pred_region
      %1427 = dma.done [#allocation4], 32
    $region97: #{encode_image.1} parent=1 // pred_fallthru
      _
    %1428 = vsyncpa [#allocation4], 1

</llo_original>
